<compile_context>
chip_gen: v5e
topology: v5e:2x2
jax: 0.10.0
libtpu: 0.0.40
codegen_flags: <defaults>
</compile_context>

<pallas_src>
import functools

import jax
import jax.numpy as jnp
from jax.experimental import pallas as pl
from jax.experimental.pallas import tpu as pltpu


def _round_up(x: int, m: int) -> int:
    return (x + m - 1) // m * m


# --------------------------------- kernel -------------------------------------
def _icm_kernel(obs_ref, nobs_ref, act_ref,
                we_ref, be_ref, w1_ref, b1_ref, w2_ref, b2_ref, w3_ref, b3_ref,
                out_ref,
                *, input_dim: int, fp: int, ap: int, compute_dtype):
    f32 = jnp.float32
    cd = compute_dtype
    tb = obs_ref.shape[0]

    # --- encoder: ONE fused matmul over [obs ; next_obs] (2*tb rows) ----------
    both = jnp.concatenate([obs_ref[...], nobs_ref[...]], axis=0).astype(cd)
    enc = jnp.dot(both, we_ref[...], preferred_element_type=f32) + be_ref[...]
    enc = jnp.maximum(enc, 0.0)
    state = enc[:tb]            # (tb, P)   padded feature columns are exactly 0
    next_state = enc[tb:]       # (tb, P)

    # --- one-hot(action) over the padded action width --------------------------
    iota = jax.lax.broadcasted_iota(jnp.int32, (tb, ap), 1)
    ohot = (iota == act_ref[...]).astype(f32)          # padded cols can never be hot

    # --- fused layer 1 of forward_net + inverse_net -----------------------------
    #   z = [state | one_hot | next_state]  @  block-weight -> [fwd hidden | inv hidden]
    z = jnp.concatenate([state, ohot, next_state], axis=1).astype(cd)
    hg = jnp.maximum(jnp.dot(z, w1_ref[...], preferred_element_type=f32)
                     + b1_ref[...], 0.0)               # (tb, 2*Fp)

    # --- fused layer 2 (block diagonal): fwd hidden2 | inverse logits -----------
    c2 = jnp.dot(hg.astype(cd), w2_ref[...], preferred_element_type=f32) + b2_ref[...]
    h2 = jnp.maximum(c2[:, :fp], 0.0)                  # (tb, Fp)
    logits = c2[:, fp:]                                # (tb, Ap), padded cols bias=-1e30

    # --- layer 3 of forward_net --------------------------------------------------
    pred = jnp.dot(h2.astype(cd), w3_ref[...], preferred_element_type=f32) + b3_ref[...]

    # --- per-row losses ----------------------------------------------------------
    # forward (MSE, reduction='none') row mean; padded feature columns contribute 0.
    diff = pred - next_state
    fwd_row = jnp.sum(diff * diff, axis=-1, keepdims=True) * (1.0 / input_dim)  # (tb,1)

    # inverse: cross-entropy vs the one-hot target (soft-target form), per row.
    m = jnp.max(logits, axis=-1, keepdims=True)
    s = logits - m
    logsm = s - jnp.log(jnp.sum(jnp.exp(s), axis=-1, keepdims=True))
    inv_row = -jnp.sum(ohot * logsm, axis=-1, keepdims=True)                     # (tb,1)

    # Lane-dense output slab: [0:128) fwd row mean (== reward), [128:256) inverse CE.
    out_ref[...] = jnp.concatenate(
        [jnp.broadcast_to(fwd_row, (tb, 128)),
         jnp.broadcast_to(inv_row, (tb, 128))], axis=1)


# ------------------------- host-side fused parameter prep ----------------------
def prepare_fused_params(params, compute_dtype=jnp.float32):
    """Builds 128-lane-padded, pre-concatenated block weights (do this once & cache)."""
    (we, be, wi1s, wi1n, bi1, wi2, bi2, wf1s, wf1a, bf1, wf2, bf2, wf3, bf3) = params
    obs_dim, input_dim = we.shape
    features_dim, actions_dim = wi2.shape
    P = _round_up(input_dim, 128)
    Fp = _round_up(features_dim, 128)
    Ap = _round_up(actions_dim, 128)
    f32 = jnp.float32
    NEG = jnp.float32(-1e30)   # masks padded logits before the softmax

    # encoder
    we_p = jnp.zeros((obs_dim, P), f32).at[:, :input_dim].set(we)
    be_p = jnp.zeros((1, P), f32).at[:, :input_dim].set(be)

    # fused layer 1:  z = [state(P) | one_hot(Ap) | next_state(P)]
    w1 = jnp.zeros((2 * P + Ap, 2 * Fp), f32)
    w1 = w1.at[:input_dim, :features_dim].set(wf1s)
    w1 = w1.at[:input_dim, Fp:Fp + features_dim].set(wi1s)
    w1 = w1.at[P:P + actions_dim, :features_dim].set(wf1a)
    w1 = w1.at[P + Ap:P + Ap + input_dim, Fp:Fp + features_dim].set(wi1n)
    b1 = jnp.zeros((1, 2 * Fp), f32)
    b1 = b1.at[:, :features_dim].set(bf1)
    b1 = b1.at[:, Fp:Fp + features_dim].set(bi1)

    # fused layer 2 (block diagonal): cols [0:Fp) forward hidden2, [Fp:Fp+Ap) logits
    w2 = jnp.zeros((2 * Fp, Fp + Ap), f32)
    w2 = w2.at[:features_dim, :features_dim].set(wf2)
    w2 = w2.at[Fp:Fp + features_dim, Fp:Fp + actions_dim].set(wi2)
    b2 = jnp.zeros((1, Fp + Ap), f32)
    b2 = b2.at[:, :features_dim].set(bf2)
    b2 = b2.at[:, Fp:Fp + actions_dim].set(bi2)
    b2 = b2.at[:, Fp + actions_dim:].set(NEG)

    # forward_net layer 3
    w3 = jnp.zeros((Fp, P), f32).at[:features_dim, :input_dim].set(wf3)
    b3 = jnp.zeros((1, P), f32).at[:, :input_dim].set(bf3)

    weights = tuple(w.astype(compute_dtype) for w in (we_p, w1, w2, w3))
    biases = (be_p, b1, b2, b3)                       # biases stay f32 (f32 accumulate)
    dims = dict(obs_dim=obs_dim, input_dim=input_dim, features_dim=features_dim,
                actions_dim=actions_dim, p=P, fp=Fp, ap=Ap)
    return weights, biases, dims


# ---------------------------------- wrapper ------------------------------------
def icm_forward(obs, next_obs, action, params, *, forward_loss_weight,
                tile_b=128, compute_dtype=jnp.float32):
    """obs/next_obs: (B, obs_dim) f32, action: (B,) int.  Returns (loss, reward(B,1))."""
    B, obs_dim = obs.shape
    weights, biases, dims = prepare_fused_params(params, compute_dtype=compute_dtype)
    we_p, w1, w2, w3 = weights
    be_p, b1, b2, b3 = biases
    Fp, Ap = dims["fp"], dims["ap"]
    input_dim = dims["input_dim"]

    tb = tile_b                                   # multiple of 8; 128-1024 for big B.
    nt = pl.cdiv(B, tb)
    b_pad = nt * tb
    act2d = action.astype(jnp.int32).reshape(B, 1)
    if b_pad != B:                                # ragged last tile: zero-pad rows,
        pad = ((0, b_pad - B), (0, 0))            # padded rows are sliced off below.
        obs = jnp.pad(obs, pad)
        next_obs = jnp.pad(next_obs, pad)
        act2d = jnp.pad(act2d, pad)

    kernel = functools.partial(_icm_kernel, input_dim=input_dim, fp=Fp, ap=Ap,
                               compute_dtype=compute_dtype)

    tile_map = lambda i: (i, 0)
    fixed_map = lambda i: (0, 0)                  # weights stay VMEM-resident
    in_specs = [
        pl.BlockSpec((tb, obs_dim), tile_map),
        pl.BlockSpec((tb, obs_dim), tile_map),
        pl.BlockSpec((tb, 1), tile_map),
        pl.BlockSpec(we_p.shape, fixed_map),
        pl.BlockSpec(be_p.shape, fixed_map),
        pl.BlockSpec(w1.shape, fixed_map),
        pl.BlockSpec(b1.shape, fixed_map),
        pl.BlockSpec(w2.shape, fixed_map),
        pl.BlockSpec(b2.shape, fixed_map),
        pl.BlockSpec(w3.shape, fixed_map),
        pl.BlockSpec(b3.shape, fixed_map),
    ]
    out_spec = pl.BlockSpec((tb, 256), tile_map)

    rowstats = pl.pallas_call(
        kernel,
        out_shape=jax.ShapeDtypeStruct((b_pad, 256), jnp.float32),
        grid_spec=pltpu.PrefetchScalarGridSpec(
            num_scalar_prefetch=0,
            grid=(nt,),
            in_specs=in_specs,
            out_specs=out_spec),
        compiler_params=pltpu.CompilerParams(
            dimension_semantics=("parallel",),      # megacore sharding on v7x
            vmem_limit_bytes=32 << 20),             # ~2 MiB/tile used; fits 64 MiB v7x
    )(obs, next_obs, act2d, we_p, be_p, w1, b1, w2, b2, w3, b3)

    # Finish the (tiny) reductions in the wrapper so the grid axis stays parallel.
    fwd_rows = rowstats[:B, 0]                     # per-row forward MSE mean
    inv_rows = rowstats[:B, 128]                   # per-row inverse CE
    w = jnp.float32(forward_loss_weight)
    loss = w * jnp.mean(fwd_rows) + (1.0 - w) * jnp.mean(inv_rows)
    reward = rowstats[:B, 0:1]                     # (B, 1) intrinsic reward
    return loss, reward


# ----------------------------- pure-JAX reference ------------------------------
def icm_reference(obs, next_obs, action, params, *, forward_loss_weight, actions_dim):
    (we, be, wi1s, wi1n, bi1, wi2, bi2, wf1s, wf1a, bf1, wf2, bf2, wf3, bf3) = params
    state = jnp.maximum(obs @ we + be, 0.0)
    next_state = jnp.maximum(next_obs @ we + be, 0.0)
    ohot = jax.nn.one_hot(action, actions_dim, dtype=jnp.float32)
    h = jnp.maximum(state @ wf1s + ohot @ wf1a + bf1, 0.0)
    h = jnp.maximum(h @ wf2 + bf2, 0.0)
    next_state_pred = h @ wf3 + bf3
    g = jnp.maximum(state @ wi1s + next_state @ wi1n + bi1, 0.0)
    action_pred = g @ wi2 + bi2
    fwd = (next_state_pred - next_state) ** 2
    logp = jax.nn.log_softmax(action_pred, axis=-1)
    inv = -jnp.sum(ohot * logp, axis=-1)
    w = forward_loss_weight
    loss = w * jnp.mean(fwd) + (1 - w) * jnp.mean(inv)
    reward = jnp.mean(fwd, axis=-1, keepdims=True)
    return loss, reward


def make_params(key, obs_dim, input_dim, features_dim, actions_dim):
    ks = jax.random.split(key, 14)
    def lin(k, fan_in, fan_out):
        scale = 1.0 / jnp.sqrt(jnp.float32(fan_in))
        return jax.random.uniform(k, (fan_in, fan_out), jnp.float32, -scale, scale)
    def bias(k, fan_in, fan_out):
        scale = 1.0 / jnp.sqrt(jnp.float32(fan_in))
        return jax.random.uniform(k, (1, fan_out), jnp.float32, -scale, scale)
    we = lin(ks[0], obs_dim, input_dim);           be = bias(ks[1], obs_dim, input_dim)
    # inverse_net: Linear(2*input_dim, features_dim) split into state / next_state halves
    wi1s = lin(ks[2], input_dim, features_dim)
    wi1n = lin(ks[3], input_dim, features_dim);    bi1 = bias(ks[4], 2 * input_dim, features_dim)
    wi2 = lin(ks[5], features_dim, actions_dim);   bi2 = bias(ks[6], features_dim, actions_dim)
    # forward_net: Linear(input_dim + actions_dim, features_dim) split into halves
    wf1s = lin(ks[7], input_dim, features_dim)
    wf1a = lin(ks[8], actions_dim, features_dim);  bf1 = bias(ks[9], input_dim + actions_dim, features_dim)
    wf2 = lin(ks[10], features_dim, features_dim); bf2 = bias(ks[11], features_dim, features_dim)
    wf3 = lin(ks[12], features_dim, input_dim);    bf3 = bias(ks[13], features_dim, input_dim)
    return (we, be, wi1s, wi1n, bi1, wi2, bi2, wf1s, wf1a, bf1, wf2, bf2, wf3, bf3)


if __name__ == "__main__":
    B, OBS_DIM = 200, 16        # ragged batch -> exercises the padded last tile
    INPUT_DIM, FEATURES_DIM, ACTIONS_DIM = 32, 32, 4
    FORWARD_LOSS_WEIGHT = 0.2

    key = jax.random.PRNGKey(0)
    k_obs, k_nobs, k_act, k_params = jax.random.split(key, 4)
    obs = jax.random.normal(k_obs, (B, OBS_DIM), jnp.float32)
    next_obs = jax.random.normal(k_nobs, (B, OBS_DIM), jnp.float32)
    action = jax.random.randint(k_act, (B,), 0, ACTIONS_DIM, jnp.int32)
    params = make_params(k_params, OBS_DIM, INPUT_DIM, FEATURES_DIM, ACTIONS_DIM)

    ref_loss, ref_reward = icm_reference(obs, next_obs, action, params,
                                         forward_loss_weight=FORWARD_LOSS_WEIGHT,
                                         actions_dim=ACTIONS_DIM)

    # f32 MXU operands: tight tolerance.
    loss, reward = icm_forward(obs, next_obs, action, params,
                               forward_loss_weight=FORWARD_LOSS_WEIGHT)
    jax.block_until_ready((loss, reward))
    assert jnp.allclose(loss, ref_loss, atol=1e-4, rtol=1e-4), (loss, ref_loss)
    assert jnp.allclose(reward, ref_reward, atol=1e-4, rtol=1e-4)

    # bf16 MXU operands (v6e/v7x fast path), f32 accumulation: loose tolerance.
    loss_bf, reward_bf = icm_forward(obs, next_obs, action, params,
                                     forward_loss_weight=FORWARD_LOSS_WEIGHT,
                                     compute_dtype=jnp.bfloat16)
    jax.block_until_ready((loss_bf, reward_bf))
    assert jnp.allclose(loss_bf, ref_loss, atol=5e-2, rtol=1e-1), (loss_bf, ref_loss)
    assert jnp.allclose(reward_bf, ref_reward, atol=1e-1, rtol=1e-1)

    print("KERNEL_OK")
</pallas_src>

<mosaic_0001>
module attributes {stable_mosaic.version = 11 : i64} {
  func.func @_icm_kernel(%arg0: i32, %arg1: memref<128x16xf32, #tpu.memory_space<vmem>>, %arg2: memref<128x16xf32, #tpu.memory_space<vmem>>, %arg3: memref<128x1xi32, #tpu.memory_space<vmem>>, %arg4: memref<16x128xf32, #tpu.memory_space<vmem>>, %arg5: memref<1x128xf32, #tpu.memory_space<vmem>>, %arg6: memref<384x256xf32, #tpu.memory_space<vmem>>, %arg7: memref<1x256xf32, #tpu.memory_space<vmem>>, %arg8: memref<256x256xf32, #tpu.memory_space<vmem>>, %arg9: memref<1x256xf32, #tpu.memory_space<vmem>>, %arg10: memref<128x128xf32, #tpu.memory_space<vmem>>, %arg11: memref<1x128xf32, #tpu.memory_space<vmem>>, %arg12: memref<128x256xf32, #tpu.memory_space<vmem>>) attributes {dimension_semantics = [#tpu.dimension_semantics<parallel>], iteration_bounds = array<i64: 2>, scalar_prefetch = 0 : i64, scratch_operands = 0 : i64, tpu.core_type = #tpu.core_type<tc>, window_params = [{transform_indices = @transform_0, window_bounds = array<i64: 128, 16>}, {transform_indices = @transform_1, window_bounds = array<i64: 128, 16>}, {transform_indices = @transform_2, window_bounds = array<i64: 128, 1>}, {pipeline_mode = #tpu.pipeline_mode<synchronous>, transform_indices = @transform_3, window_bounds = array<i64: 16, 128>}, {pipeline_mode = #tpu.pipeline_mode<synchronous>, transform_indices = @transform_4, window_bounds = array<i64: 1, 128>}, {pipeline_mode = #tpu.pipeline_mode<synchronous>, transform_indices = @transform_5, window_bounds = array<i64: 384, 256>}, {pipeline_mode = #tpu.pipeline_mode<synchronous>, transform_indices = @transform_6, window_bounds = array<i64: 1, 256>}, {pipeline_mode = #tpu.pipeline_mode<synchronous>, transform_indices = @transform_7, window_bounds = array<i64: 256, 256>}, {pipeline_mode = #tpu.pipeline_mode<synchronous>, transform_indices = @transform_8, window_bounds = array<i64: 1, 256>}, {pipeline_mode = #tpu.pipeline_mode<synchronous>, transform_indices = @transform_9, window_bounds = array<i64: 128, 128>}, {pipeline_mode = #tpu.pipeline_mode<synchronous>, transform_indices = @transform_10, window_bounds = array<i64: 1, 128>}, {transform_indices = @transform_11, window_bounds = array<i64: 128, 256>}]} {
    %c0 = arith.constant 0 : index
    %c0_0 = arith.constant 0 : index
    %0 = vector.load %arg1[%c0, %c0_0] : memref<128x16xf32, #tpu.memory_space<vmem>>, vector<128x16xf32>
    %c0_1 = arith.constant 0 : index
    %c0_2 = arith.constant 0 : index
    %1 = vector.load %arg2[%c0_1, %c0_2] : memref<128x16xf32, #tpu.memory_space<vmem>>, vector<128x16xf32>
    %2 = tpu.concatenate %0, %1 in 0 : vector<128x16xf32>, vector<128x16xf32> -> vector<256x16xf32>
    %c0_3 = arith.constant 0 : index
    %c0_4 = arith.constant 0 : index
    %3 = vector.load %arg4[%c0_3, %c0_4] : memref<16x128xf32, #tpu.memory_space<vmem>>, vector<16x128xf32>
    %cst = arith.constant dense<0.000000e+00> : vector<256x128xf32>
    %4 = tpu.matmul %2, %3, %cst {dimension_numbers = #tpu.dot_dimension_numbers<[1], [0], [0], [1], [0, 0, 1, 1], [], []>} : vector<256x16xf32>, vector<16x128xf32>, vector<256x128xf32> -> vector<256x128xf32>
    %c0_5 = arith.constant 0 : index
    %c0_6 = arith.constant 0 : index
    %5 = vector.load %arg5[%c0_5, %c0_6] : memref<1x128xf32, #tpu.memory_space<vmem>>, vector<1x128xf32>
    %6 = vector.broadcast %5 : vector<1x128xf32> to vector<256x128xf32>
    %7 = arith.addf %4, %6 : vector<256x128xf32>
    %cst_7 = arith.constant 0.000000e+00 : f32
    %8 = vector.broadcast %cst_7 : f32 to vector<256x128xf32>
    %9 = arith.maximumf %7, %8 : vector<256x128xf32>
    %10 = vector.extract_strided_slice %9 {offsets = [0, 0], sizes = [128, 128], strides = [1, 1]} : vector<256x128xf32> to vector<128x128xf32>
    %11 = vector.extract_strided_slice %9 {offsets = [128, 0], sizes = [128, 128], strides = [1, 1]} : vector<256x128xf32> to vector<128x128xf32>
    %12 = tpu.iota {dimensions = array<i32: 1>} : vector<128x128xi32>
    %c0_8 = arith.constant 0 : index
    %c0_9 = arith.constant 0 : index
    %13 = vector.load %arg3[%c0_8, %c0_9] : memref<128x1xi32, #tpu.memory_space<vmem>>, vector<128x1xi32>
    %14 = vector.broadcast %13 : vector<128x1xi32> to vector<128x128xi32>
    %15 = arith.cmpi eq, %12, %14 : vector<128x128xi32>
    %16 = arith.extui %15 : vector<128x128xi1> to vector<128x128xi32>
    %17 = arith.sitofp %16 : vector<128x128xi32> to vector<128x128xf32>
    %18 = tpu.concatenate %10, %17, %11 in 1 : vector<128x128xf32>, vector<128x128xf32>, vector<128x128xf32> -> vector<128x384xf32>
    %c0_10 = arith.constant 0 : index
    %c0_11 = arith.constant 0 : index
    %19 = vector.load %arg6[%c0_10, %c0_11] : memref<384x256xf32, #tpu.memory_space<vmem>>, vector<384x256xf32>
    %cst_12 = arith.constant dense<0.000000e+00> : vector<128x256xf32>
    %20 = tpu.matmul %18, %19, %cst_12 {dimension_numbers = #tpu.dot_dimension_numbers<[1], [0], [0], [1], [0, 0, 1, 1], [], []>} : vector<128x384xf32>, vector<384x256xf32>, vector<128x256xf32> -> vector<128x256xf32>
    %c0_13 = arith.constant 0 : index
    %c0_14 = arith.constant 0 : index
    %21 = vector.load %arg7[%c0_13, %c0_14] : memref<1x256xf32, #tpu.memory_space<vmem>>, vector<1x256xf32>
    %22 = vector.broadcast %21 : vector<1x256xf32> to vector<128x256xf32>
    %23 = arith.addf %20, %22 : vector<128x256xf32>
    %cst_15 = arith.constant 0.000000e+00 : f32
    %24 = vector.broadcast %cst_15 : f32 to vector<128x256xf32>
    %25 = arith.maximumf %23, %24 : vector<128x256xf32>
    %c0_16 = arith.constant 0 : index
    %c0_17 = arith.constant 0 : index
    %26 = vector.load %arg8[%c0_16, %c0_17] : memref<256x256xf32, #tpu.memory_space<vmem>>, vector<256x256xf32>
    %cst_18 = arith.constant dense<0.000000e+00> : vector<128x256xf32>
    %27 = tpu.matmul %25, %26, %cst_18 {dimension_numbers = #tpu.dot_dimension_numbers<[1], [0], [0], [1], [0, 0, 1, 1], [], []>} : vector<128x256xf32>, vector<256x256xf32>, vector<128x256xf32> -> vector<128x256xf32>
    %c0_19 = arith.constant 0 : index
    %c0_20 = arith.constant 0 : index
    %28 = vector.load %arg9[%c0_19, %c0_20] : memref<1x256xf32, #tpu.memory_space<vmem>>, vector<1x256xf32>
    %29 = vector.broadcast %28 : vector<1x256xf32> to vector<128x256xf32>
    %30 = arith.addf %27, %29 : vector<128x256xf32>
    %31 = vector.extract_strided_slice %30 {offsets = [0, 0], sizes = [128, 128], strides = [1, 1]} : vector<128x256xf32> to vector<128x128xf32>
    %cst_21 = arith.constant 0.000000e+00 : f32
    %32 = vector.broadcast %cst_21 : f32 to vector<128x128xf32>
    %33 = arith.maximumf %31, %32 : vector<128x128xf32>
    %34 = vector.extract_strided_slice %30 {offsets = [0, 128], sizes = [128, 128], strides = [1, 1]} : vector<128x256xf32> to vector<128x128xf32>
    %c0_22 = arith.constant 0 : index
    %c0_23 = arith.constant 0 : index
    %35 = vector.load %arg10[%c0_22, %c0_23] : memref<128x128xf32, #tpu.memory_space<vmem>>, vector<128x128xf32>
    %cst_24 = arith.constant dense<0.000000e+00> : vector<128x128xf32>
    %36 = tpu.matmul %33, %35, %cst_24 {dimension_numbers = #tpu.dot_dimension_numbers<[1], [0], [0], [1], [0, 0, 1, 1], [], []>} : vector<128x128xf32>, vector<128x128xf32>, vector<128x128xf32> -> vector<128x128xf32>
    %c0_25 = arith.constant 0 : index
    %c0_26 = arith.constant 0 : index
    %37 = vector.load %arg11[%c0_25, %c0_26] : memref<1x128xf32, #tpu.memory_space<vmem>>, vector<1x128xf32>
    %38 = vector.broadcast %37 : vector<1x128xf32> to vector<128x128xf32>
    %39 = arith.addf %36, %38 : vector<128x128xf32>
    %40 = arith.subf %39, %11 : vector<128x128xf32>
    %41 = arith.mulf %40, %40 : vector<128x128xf32>
    %cst_27 = arith.constant dense<0.000000e+00> : vector<128xf32>
    %42 = vector.multi_reduction <add>, %41, %cst_27 [1] : vector<128x128xf32> to vector<128xf32>
    %43 = vector.shape_cast %42 : vector<128xf32> to vector<128x1xf32>
    %cst_28 = arith.constant 3.125000e-02 : f32
    %44 = vector.broadcast %cst_28 : f32 to vector<128x1xf32>
    %45 = arith.mulf %43, %44 : vector<128x1xf32>
    %cst_29 = arith.constant dense<0xFF800000> : vector<128xf32>
    %46 = vector.multi_reduction <maximumf>, %34, %cst_29 [1] : vector<128x128xf32> to vector<128xf32>
    %47 = vector.shape_cast %46 : vector<128xf32> to vector<128x1xf32>
    %48 = vector.broadcast %47 : vector<128x1xf32> to vector<128x128xf32>
    %49 = arith.subf %34, %48 : vector<128x128xf32>
    %50 = math.exp %49 : vector<128x128xf32>
    %cst_30 = arith.constant dense<0.000000e+00> : vector<128xf32>
    %51 = vector.multi_reduction <add>, %50, %cst_30 [1] : vector<128x128xf32> to vector<128xf32>
    %52 = vector.shape_cast %51 : vector<128xf32> to vector<128x1xf32>
    %53 = math.log %52 : vector<128x1xf32>
    %54 = vector.broadcast %53 : vector<128x1xf32> to vector<128x128xf32>
    %55 = arith.subf %49, %54 : vector<128x128xf32>
    %56 = arith.mulf %17, %55 : vector<128x128xf32>
    %cst_31 = arith.constant dense<0.000000e+00> : vector<128xf32>
    %57 = vector.multi_reduction <add>, %56, %cst_31 [1] : vector<128x128xf32> to vector<128xf32>
    %58 = vector.shape_cast %57 : vector<128xf32> to vector<128x1xf32>
    %cst_32 = arith.constant 0.000000e+00 : f32
    %59 = vector.broadcast %cst_32 : f32 to vector<128x1xf32>
    %60 = arith.subf %59, %58 : vector<128x1xf32>
    %61 = vector.shape_cast %45 : vector<128x1xf32> to vector<128x1xf32>
    %62 = vector.broadcast %61 : vector<128x1xf32> to vector<128x128xf32>
    %63 = vector.shape_cast %60 : vector<128x1xf32> to vector<128x1xf32>
    %64 = vector.broadcast %63 : vector<128x1xf32> to vector<128x128xf32>
    %65 = tpu.concatenate %62, %64 in 1 : vector<128x128xf32>, vector<128x128xf32> -> vector<128x256xf32>
    %c0_33 = arith.constant 0 : index
    %c0_34 = arith.constant 0 : index
    %66 = vector.load %arg12[%c0_33, %c0_34] : memref<128x256xf32, #tpu.memory_space<vmem>>, vector<128x256xf32>
    tpu.vector_store %arg12[%c0_33, %c0_34], %65 {strides = array<i32>} : memref<128x256xf32, #tpu.memory_space<vmem>>, vector<128x256xf32>,
    return
  }
  func.func @transform_0(%arg0: i32) -> (i32, i32) {
    %c0_i32 = arith.constant 0 : i32
    %c0_i32_0 = arith.constant 0 : i32
    return %arg0, %c0_i32 : i32, i32
  }
  func.func @transform_1(%arg0: i32) -> (i32, i32) {
    %c0_i32 = arith.constant 0 : i32
    %c0_i32_0 = arith.constant 0 : i32
    return %arg0, %c0_i32 : i32, i32
  }
  func.func @transform_2(%arg0: i32) -> (i32, i32) {
    %c0_i32 = arith.constant 0 : i32
    %c0_i32_0 = arith.constant 0 : i32
    return %arg0, %c0_i32 : i32, i32
  }
  func.func @transform_3(%arg0: i32) -> (i32, i32) {
    %c0_i32 = arith.constant 0 : i32
    %c0_i32_0 = arith.constant 0 : i32
    %c0_i32_1 = arith.constant 0 : i32
    return %c0_i32, %c0_i32_0 : i32, i32
  }
  func.func @transform_4(%arg0: i32) -> (i32, i32) {
    %c0_i32 = arith.constant 0 : i32
    %c0_i32_0 = arith.constant 0 : i32
    %c0_i32_1 = arith.constant 0 : i32
    return %c0_i32, %c0_i32_0 : i32, i32
  }
  func.func @transform_5(%arg0: i32) -> (i32, i32) {
    %c0_i32 = arith.constant 0 : i32
    %c0_i32_0 = arith.constant 0 : i32
    %c0_i32_1 = arith.constant 0 : i32
    return %c0_i32, %c0_i32_0 : i32, i32
  }
  func.func @transform_6(%arg0: i32) -> (i32, i32) {
    %c0_i32 = arith.constant 0 : i32
    %c0_i32_0 = arith.constant 0 : i32
    %c0_i32_1 = arith.constant 0 : i32
    return %c0_i32, %c0_i32_0 : i32, i32
  }
  func.func @transform_7(%arg0: i32) -> (i32, i32) {
    %c0_i32 = arith.constant 0 : i32
    %c0_i32_0 = arith.constant 0 : i32
    %c0_i32_1 = arith.constant 0 : i32
    return %c0_i32, %c0_i32_0 : i32, i32
  }
  func.func @transform_8(%arg0: i32) -> (i32, i32) {
    %c0_i32 = arith.constant 0 : i32
    %c0_i32_0 = arith.constant 0 : i32
    %c0_i32_1 = arith.constant 0 : i32
    return %c0_i32, %c0_i32_0 : i32, i32
  }
  func.func @transform_9(%arg0: i32) -> (i32, i32) {
    %c0_i32 = arith.constant 0 : i32
    %c0_i32_0 = arith.constant 0 : i32
    %c0_i32_1 = arith.constant 0 : i32
    return %c0_i32, %c0_i32_0 : i32, i32
  }
  func.func @transform_10(%arg0: i32) -> (i32, i32) {
    %c0_i32 = arith.constant 0 : i32
    %c0_i32_0 = arith.constant 0 : i32
    %c0_i32_1 = arith.constant 0 : i32
    return %c0_i32, %c0_i32_0 : i32, i32
  }
  func.func @transform_11(%arg0: i32) -> (i32, i32) {
    %c0_i32 = arith.constant 0 : i32
    %c0_i32_0 = arith.constant 0 : i32
    return %arg0, %c0_i32 : i32, i32
  }
}

</mosaic_0001>

<llo_original>
// kernel: tpu_custom_call.1
$region0: #{tpu_custom_call.1}
  #allocation0 [shape = 'u32[]', space=smem, size = 0x4, offset = 0x4, fixed_abs, tag = 'smem constant byte address 0x4 - core index']
  #allocation1 [shape = 'u32[72,128]{1,0:T(1,128)}', space=vmem, size = 0x9000, scoped, tag = 'internal scratch']
  %s0 = inlined_call_operand.vmem [shape: f32[256,16], index: 0, kind: input, shape index: {}]
  %s1 = inlined_call_operand.vmem [shape: f32[256,16], index: 1, kind: input, shape index: {}]
  %s2 = inlined_call_operand.vmem [shape: s32[256,1], index: 2, kind: input, shape index: {}]
  %s3 = inlined_call_operand.vmem [shape: f32[16,128], index: 3, kind: input, shape index: {}]
  %s4 = inlined_call_operand.vmem [shape: f32[1,128], index: 4, kind: input, shape index: {}]
  %s5 = inlined_call_operand.hbm [shape: f32[384,256], index: 5, kind: input, shape index: {}]
  %s6 = inlined_call_operand.vmem [shape: f32[1,256], index: 6, kind: input, shape index: {}]
  %s7 = inlined_call_operand.vmem [shape: f32[256,256], index: 7, kind: input, shape index: {}]
  %s8 = inlined_call_operand.vmem [shape: f32[1,256], index: 8, kind: input, shape index: {}]
  %s9 = inlined_call_operand.vmem [shape: f32[128,128], index: 9, kind: input, shape index: {}]
  %s10 = inlined_call_operand.vmem [shape: f32[1,128], index: 10, kind: input, shape index: {}]
  %s11 = inlined_call_operand.hbm [shape: f32[256,256], index: 11, kind: output, shape index: {}]
  %s12 = sld [smem:[#allocation0]]
  $region81: #{tpu_custom_call.1} parent=0
    _
  %s14 = ssub.s32 1, %s12
  %s15 = scalar_select 0, %s14, %s12
  $region1: #{tpu_custom_call.1} parent=0
    #allocation2 [shape = 'u8[393216]{0}', space=vmem, size = 0x60000, scoped, tag = 'input window, operand 5, single buffered']
    #allocation3 [shape = 's32[2]{0}', space=sflag, size = 0x8, scoped, tag = 'scoped memory for tpu_custom_call.1']
    #allocation4 [shape = 's32[2]{0}', space=sflag, size = 0x8, scoped, tag = 'scoped memory for tpu_custom_call.1']
    #allocation5 [shape = 'u8[262144]{0}', space=vmem, size = 0x40000, scoped, tag = 'output window, operand 0']
    %16 = vsyncpa [#allocation3], 0
    %17 = vsyncpa [#allocation4], 0
    %s18 = scalar_lea.sflag [#allocation4], 1
    %19 = vsyncpa %s18, 0
    loop: start=0, step=1, limit=4
    $region2: #{tpu_custom_call.1} parent=1 // loop_pre_header
      _
    $region3: #{tpu_custom_call.1} parent=1 // loop_header
      %s21 = sphi 0, %s25
      %p22 = scmp.ge.s32.totalorder %s21, 4
      %s31 = sphi 0, %s33
      %s34 = sphi 0, %s31
      %s35 = sphi 0, %s34
      %s51 = sphi 0, %s35
      %s57 = sphi 0, %s59
      %s60 = sphi 0, %s57
      %s61 = sphi 0, %s60
      %s77 = sphi 0, %s61
      %s83 = sphi 0, %s85
      %s86 = sphi 0, %s83
      %s87 = sphi 0, %s86
      %s103 = sphi 0, %s87
      %s107 = sphi 0, %s107
      %s109 = sphi 0, %s107
      %s110 = sphi 0, %s109
      %s124 = sphi 0, %s110
      %s128 = sphi 0, %s128
      %s130 = sphi 0, %s128
      %s131 = sphi 0, %s130
      %s145 = sphi 0, %s131
      %s149 = sphi 0, %s149
      %s151 = sphi 0, %s149
      %s152 = sphi 0, %s151
      %s166 = sphi 0, %s152
      %s170 = sphi 0, %s170
      %s172 = sphi 0, %s170
      %s173 = sphi 0, %s172
      %s187 = sphi 0, %s173
      %s191 = sphi 0, %s191
      %s193 = sphi 0, %s191
      %s194 = sphi 0, %s193
      %s208 = sphi 0, %s194
      %s212 = sphi 0, %s212
      %s214 = sphi 0, %s212
      %s215 = sphi 0, %s214
      %s229 = sphi 0, %s215
      %s233 = sphi 0, %s233
      %s235 = sphi 0, %s233
      %s236 = sphi 0, %s235
      %s250 = sphi 0, %s236
      %s254 = sphi 0, %s254
      %s256 = sphi 0, %s254
      %s257 = sphi 0, %s256
      %s271 = sphi 0, %s257
      %s277 = sphi 0, %s279
      %s280 = sphi 0, %s277
      %s281 = sphi 0, %s280
      %s297 = sphi 0, %s281
    $region4: #{tpu_custom_call.1} parent=1 // loop_header_branch
      %24 = sbr.rel (%p22) target = $region8
    $region5: #{tpu_custom_call.1} parent=1 // loop_body
      %s26 = ssub.s32 %s21, 1
      %s27 = ssub.s32 %s21, 2
      %s28 = sadd.s32 %s21, 1
      %s29 = ssub.s32 %s21, %s28
      %p30 = scmp.eq.s32.totalorder %s29, 0
      %s32 = sadd.s32 %s31, 1
      %s33 = scalar_select %p30, %s31, %s32
      %p36 = pneg %p30
      %p37 = scmp.eq.s32.totalorder %s21, 1
      %p38 = por %p36, %p37
      %p39 = scmp.ne.s32.totalorder %s31, %s34
      %p40 = scmp.eq.s32.totalorder %s21, 0
      %p41 = por %p39, %p40
      %p42 = scmp.ne.s32.totalorder %s31, %s34
      %p43 = scmp.eq.s32.totalorder %s26, 1
      %p44 = por %p42, %p43
      %p45 = scmp.ne.s32.totalorder %s34, %s35
      %p46 = scmp.eq.s32.totalorder %s26, 0
      %p47 = por %p45, %p46
      %p48 = scmp.ne.s32.totalorder %s34, %s35
      %p49 = scmp.eq.s32.totalorder %s27, 1
      %p50 = por %p48, %p49
      %p52 = scmp.ne.s32.totalorder %s35, %s51
      %p53 = scmp.eq.s32.totalorder %s27, 0
      %p54 = por %p52, %p53
      %s55 = ssub.s32 %s21, %s28
      %p56 = scmp.eq.s32.totalorder %s55, 0
      %s58 = sadd.s32 %s57, 1
      %s59 = scalar_select %p56, %s57, %s58
      %p62 = pneg %p56
      %p63 = scmp.eq.s32.totalorder %s21, 1
      %p64 = por %p62, %p63
      %p65 = scmp.ne.s32.totalorder %s57, %s60
      %p66 = scmp.eq.s32.totalorder %s21, 0
      %p67 = por %p65, %p66
      %p68 = scmp.ne.s32.totalorder %s57, %s60
      %p69 = scmp.eq.s32.totalorder %s26, 1
      %p70 = por %p68, %p69
      %p71 = scmp.ne.s32.totalorder %s60, %s61
      %p72 = scmp.eq.s32.totalorder %s26, 0
      %p73 = por %p71, %p72
      %p74 = scmp.ne.s32.totalorder %s60, %s61
      %p75 = scmp.eq.s32.totalorder %s27, 1
      %p76 = por %p74, %p75
      %p78 = scmp.ne.s32.totalorder %s61, %s77
      %p79 = scmp.eq.s32.totalorder %s27, 0
      %p80 = por %p78, %p79
      %s81 = ssub.s32 %s21, %s28
      %p82 = scmp.eq.s32.totalorder %s81, 0
      %s84 = sadd.s32 %s83, 1
      %s85 = scalar_select %p82, %s83, %s84
      %p88 = pneg %p82
      %p89 = scmp.eq.s32.totalorder %s21, 1
      %p90 = por %p88, %p89
      %p91 = scmp.ne.s32.totalorder %s83, %s86
      %p92 = scmp.eq.s32.totalorder %s21, 0
      %p93 = por %p91, %p92
      %p94 = scmp.ne.s32.totalorder %s83, %s86
      %p95 = scmp.eq.s32.totalorder %s26, 1
      %p96 = por %p94, %p95
      %p97 = scmp.ne.s32.totalorder %s86, %s87
      %p98 = scmp.eq.s32.totalorder %s26, 0
      %p99 = por %p97, %p98
      %p100 = scmp.ne.s32.totalorder %s86, %s87
      %p101 = scmp.eq.s32.totalorder %s27, 1
      %p102 = por %p100, %p101
      %p104 = scmp.ne.s32.totalorder %s87, %s103
      %p105 = scmp.eq.s32.totalorder %s27, 0
      %p106 = por %p104, %p105
      %s108 = sadd.s32 %s107, 1
      %p111 = scmp.eq.s32.totalorder %s21, 1
      %p112 = scmp.ne.s32.totalorder %s107, %s109
      %p113 = scmp.eq.s32.totalorder %s21, 0
      %p114 = por %p112, %p113
      %p115 = scmp.ne.s32.totalorder %s107, %s109
      %p116 = scmp.eq.s32.totalorder %s26, 1
      %p117 = por %p115, %p116
      %p118 = scmp.ne.s32.totalorder %s109, %s110
      %p119 = scmp.eq.s32.totalorder %s26, 0
      %p120 = por %p118, %p119
      %p121 = scmp.ne.s32.totalorder %s109, %s110
      %p122 = scmp.eq.s32.totalorder %s27, 1
      %p123 = por %p121, %p122
      %p125 = scmp.ne.s32.totalorder %s110, %s124
      %p126 = scmp.eq.s32.totalorder %s27, 0
      %p127 = por %p125, %p126
      %s129 = sadd.s32 %s128, 1
      %p132 = scmp.eq.s32.totalorder %s21, 1
      %p133 = scmp.ne.s32.totalorder %s128, %s130
      %p134 = scmp.eq.s32.totalorder %s21, 0
      %p135 = por %p133, %p134
      %p136 = scmp.ne.s32.totalorder %s128, %s130
      %p137 = scmp.eq.s32.totalorder %s26, 1
      %p138 = por %p136, %p137
      %p139 = scmp.ne.s32.totalorder %s130, %s131
      %p140 = scmp.eq.s32.totalorder %s26, 0
      %p141 = por %p139, %p140
      %p142 = scmp.ne.s32.totalorder %s130, %s131
      %p143 = scmp.eq.s32.totalorder %s27, 1
      %p144 = por %p142, %p143
      %p146 = scmp.ne.s32.totalorder %s131, %s145
      %p147 = scmp.eq.s32.totalorder %s27, 0
      %p148 = por %p146, %p147
      %s150 = sadd.s32 %s149, 1
      %p153 = scmp.eq.s32.totalorder %s21, 1
      %p154 = scmp.ne.s32.totalorder %s149, %s151
      %p155 = scmp.eq.s32.totalorder %s21, 0
      %p156 = por %p154, %p155
      %p157 = scmp.ne.s32.totalorder %s149, %s151
      %p158 = scmp.eq.s32.totalorder %s26, 1
      %p159 = por %p157, %p158
      %p160 = scmp.ne.s32.totalorder %s151, %s152
      %p161 = scmp.eq.s32.totalorder %s26, 0
      %p162 = por %p160, %p161
      %p163 = scmp.ne.s32.totalorder %s151, %s152
      %p164 = scmp.eq.s32.totalorder %s27, 1
      %p165 = por %p163, %p164
      %p167 = scmp.ne.s32.totalorder %s152, %s166
      %p168 = scmp.eq.s32.totalorder %s27, 0
      %p169 = por %p167, %p168
      %s171 = sadd.s32 %s170, 1
      %p174 = scmp.eq.s32.totalorder %s21, 1
      %p175 = scmp.ne.s32.totalorder %s170, %s172
      %p176 = scmp.eq.s32.totalorder %s21, 0
      %p177 = por %p175, %p176
      %p178 = scmp.ne.s32.totalorder %s170, %s172
      %p179 = scmp.eq.s32.totalorder %s26, 1
      %p180 = por %p178, %p179
      %p181 = scmp.ne.s32.totalorder %s172, %s173
      %p182 = scmp.eq.s32.totalorder %s26, 0
      %p183 = por %p181, %p182
      %p184 = scmp.ne.s32.totalorder %s172, %s173
      %p185 = scmp.eq.s32.totalorder %s27, 1
      %p186 = por %p184, %p185
      %p188 = scmp.ne.s32.totalorder %s173, %s187
      %p189 = scmp.eq.s32.totalorder %s27, 0
      %p190 = por %p188, %p189
      %s192 = sadd.s32 %s191, 1
      %p195 = scmp.eq.s32.totalorder %s21, 1
      %p196 = scmp.ne.s32.totalorder %s191, %s193
      %p197 = scmp.eq.s32.totalorder %s21, 0
      %p198 = por %p196, %p197
      %p199 = scmp.ne.s32.totalorder %s191, %s193
      %p200 = scmp.eq.s32.totalorder %s26, 1
      %p201 = por %p199, %p200
      %p202 = scmp.ne.s32.totalorder %s193, %s194
      %p203 = scmp.eq.s32.totalorder %s26, 0
      %p204 = por %p202, %p203
      %p205 = scmp.ne.s32.totalorder %s193, %s194
      %p206 = scmp.eq.s32.totalorder %s27, 1
      %p207 = por %p205, %p206
      %p209 = scmp.ne.s32.totalorder %s194, %s208
      %p210 = scmp.eq.s32.totalorder %s27, 0
      %p211 = por %p209, %p210
      %s213 = sadd.s32 %s212, 1
      %p216 = scmp.eq.s32.totalorder %s21, 1
      %p217 = scmp.ne.s32.totalorder %s212, %s214
      %p218 = scmp.eq.s32.totalorder %s21, 0
      %p219 = por %p217, %p218
      %p220 = scmp.ne.s32.totalorder %s212, %s214
      %p221 = scmp.eq.s32.totalorder %s26, 1
      %p222 = por %p220, %p221
      %p223 = scmp.ne.s32.totalorder %s214, %s215
      %p224 = scmp.eq.s32.totalorder %s26, 0
      %p225 = por %p223, %p224
      %p226 = scmp.ne.s32.totalorder %s214, %s215
      %p227 = scmp.eq.s32.totalorder %s27, 1
      %p228 = por %p226, %p227
      %p230 = scmp.ne.s32.totalorder %s215, %s229
      %p231 = scmp.eq.s32.totalorder %s27, 0
      %p232 = por %p230, %p231
      %s234 = sadd.s32 %s233, 1
      %p237 = scmp.eq.s32.totalorder %s21, 1
      %p238 = scmp.ne.s32.totalorder %s233, %s235
      %p239 = scmp.eq.s32.totalorder %s21, 0
      %p240 = por %p238, %p239
      %p241 = scmp.ne.s32.totalorder %s233, %s235
      %p242 = scmp.eq.s32.totalorder %s26, 1
      %p243 = por %p241, %p242
      %p244 = scmp.ne.s32.totalorder %s235, %s236
      %p245 = scmp.eq.s32.totalorder %s26, 0
      %p246 = por %p244, %p245
      %p247 = scmp.ne.s32.totalorder %s235, %s236
      %p248 = scmp.eq.s32.totalorder %s27, 1
      %p249 = por %p247, %p248
      %p251 = scmp.ne.s32.totalorder %s236, %s250
      %p252 = scmp.eq.s32.totalorder %s27, 0
      %p253 = por %p251, %p252
      %s255 = sadd.s32 %s254, 1
      %p258 = scmp.eq.s32.totalorder %s21, 1
      %p259 = scmp.ne.s32.totalorder %s254, %s256
      %p260 = scmp.eq.s32.totalorder %s21, 0
      %p261 = por %p259, %p260
      %p262 = scmp.ne.s32.totalorder %s254, %s256
      %p263 = scmp.eq.s32.totalorder %s26, 1
      %p264 = por %p262, %p263
      %p265 = scmp.ne.s32.totalorder %s256, %s257
      %p266 = scmp.eq.s32.totalorder %s26, 0
      %p267 = por %p265, %p266
      %p268 = scmp.ne.s32.totalorder %s256, %s257
      %p269 = scmp.eq.s32.totalorder %s27, 1
      %p270 = por %p268, %p269
      %p272 = scmp.ne.s32.totalorder %s257, %s271
      %p273 = scmp.eq.s32.totalorder %s27, 0
      %p274 = por %p272, %p273
      %s275 = ssub.s32 %s21, %s28
      %p276 = scmp.eq.s32.totalorder %s275, 0
      %s278 = sadd.s32 %s277, 1
      %s279 = scalar_select %p276, %s277, %s278
      %p282 = pneg %p276
      %p283 = scmp.eq.s32.totalorder %s21, 1
      %p284 = por %p282, %p283
      %p285 = scmp.ne.s32.totalorder %s277, %s280
      %p286 = scmp.eq.s32.totalorder %s21, 0
      %p287 = por %p285, %p286
      %p288 = scmp.ne.s32.totalorder %s277, %s280
      %p289 = scmp.eq.s32.totalorder %s26, 1
      %p290 = por %p288, %p289
      %p291 = scmp.ne.s32.totalorder %s280, %s281
      %p292 = scmp.eq.s32.totalorder %s26, 0
      %p293 = por %p291, %p292
      %p294 = scmp.ne.s32.totalorder %s280, %s281
      %p295 = scmp.eq.s32.totalorder %s27, 1
      %p296 = por %p294, %p295
      %p298 = scmp.ne.s32.totalorder %s281, %s297
      %p299 = scmp.eq.s32.totalorder %s27, 0
      %p300 = por %p298, %p299
      %p301 = scmp.le.s32.totalorder 1, %s21
      %p302 = scmp.lt.s32.totalorder %s21, 3
      %p303 = pnand %p301, %p302
      %p304 = pneg %p303
      // Predicated region
      $region9: #{tpu_custom_call.1} parent=5 // pred_check
        _
      $region10: #{tpu_custom_call.1} parent=5 // pred_check_branch
        %306 = sbr.rel (%p303) target = $region12
      $region11: #{tpu_custom_call.1} parent=5 // pred_region
        %s307 = ssub.s32 %s21, 1
        // Predicated region
        $region13: #{tpu_custom_call.1} parent=11 // pred_check
          %p308 = pneg %p120
        $region14: #{tpu_custom_call.1} parent=11 // pred_check_branch
          %310 = sbr.rel (%p308) target = $region16
        $region15: #{tpu_custom_call.1} parent=11 // pred_region
          _
        $region16: #{tpu_custom_call.1} parent=11 // pred_fallthru
          _
        // Predicated region
        $region17: #{tpu_custom_call.1} parent=11 // pred_check
          %p311 = pneg %p141
        $region18: #{tpu_custom_call.1} parent=11 // pred_check_branch
          %313 = sbr.rel (%p311) target = $region20
        $region19: #{tpu_custom_call.1} parent=11 // pred_region
          _
        $region20: #{tpu_custom_call.1} parent=11 // pred_fallthru
          _
        // Predicated region
        $region21: #{tpu_custom_call.1} parent=11 // pred_check
          %p314 = pneg %p162
        $region22: #{tpu_custom_call.1} parent=11 // pred_check_branch
          %316 = sbr.rel (%p314) target = $region24
        $region23: #{tpu_custom_call.1} parent=11 // pred_region
          %318 = vsyncadd [#allocation3], 0
          %s319 = sshll.u32 %s5, 4
          %s320 = int_to_ptr.hbm [resolvable:$true] %s319
          %s321 = sshll.u32 [#allocation2], 4
          %s322 = int_to_ptr.vmem [resolvable:$true] %s321
          %327 = dma.hbm_to_vmem [thread:$0]  %s320, 12288, %s322, [#allocation3], 256, 256, 16
        $region24: #{tpu_custom_call.1} parent=11 // pred_fallthru
          _
        // Predicated region
        $region25: #{tpu_custom_call.1} parent=11 // pred_check
          %p328 = pneg %p183
        $region26: #{tpu_custom_call.1} parent=11 // pred_check_branch
          %330 = sbr.rel (%p328) target = $region28
        $region27: #{tpu_custom_call.1} parent=11 // pred_region
          _
        $region28: #{tpu_custom_call.1} parent=11 // pred_fallthru
          _
        // Predicated region
        $region29: #{tpu_custom_call.1} parent=11 // pred_check
          %p331 = pneg %p204
        $region30: #{tpu_custom_call.1} parent=11 // pred_check_branch
          %333 = sbr.rel (%p331) target = $region32
        $region31: #{tpu_custom_call.1} parent=11 // pred_region
          _
        $region32: #{tpu_custom_call.1} parent=11 // pred_fallthru
          _
        // Predicated region
        $region33: #{tpu_custom_call.1} parent=11 // pred_check
          %p334 = pneg %p225
        $region34: #{tpu_custom_call.1} parent=11 // pred_check_branch
          %336 = sbr.rel (%p334) target = $region36
        $region35: #{tpu_custom_call.1} parent=11 // pred_region
          _
        $region36: #{tpu_custom_call.1} parent=11 // pred_fallthru
          _
        // Predicated region
        $region37: #{tpu_custom_call.1} parent=11 // pred_check
          %p337 = pneg %p246
        $region38: #{tpu_custom_call.1} parent=11 // pred_check_branch
          %339 = sbr.rel (%p337) target = $region40
        $region39: #{tpu_custom_call.1} parent=11 // pred_region
          _
        $region40: #{tpu_custom_call.1} parent=11 // pred_fallthru
          _
        // Predicated region
        $region41: #{tpu_custom_call.1} parent=11 // pred_check
          %p340 = pneg %p267
        $region42: #{tpu_custom_call.1} parent=11 // pred_check_branch
          %342 = sbr.rel (%p340) target = $region44
        $region43: #{tpu_custom_call.1} parent=11 // pred_region
          _
        $region44: #{tpu_custom_call.1} parent=11 // pred_fallthru
          _
      $region12: #{tpu_custom_call.1} parent=5 // pred_fallthru
        _
      %p343 = scmp.lt.s32.totalorder %s21, 2
      // Predicated region
      $region45: #{tpu_custom_call.1} parent=5 // pred_check
        %p344 = pneg %p343
      $region46: #{tpu_custom_call.1} parent=5 // pred_check_branch
        %346 = sbr.rel (%p344) target = $region48
      $region47: #{tpu_custom_call.1} parent=5 // pred_region
        // Predicated region
        $region49: #{tpu_custom_call.1} parent=47 // pred_check
          %p347 = pneg %p41
        $region50: #{tpu_custom_call.1} parent=47 // pred_check_branch
          %349 = sbr.rel (%p347) target = $region52
        $region51: #{tpu_custom_call.1} parent=47 // pred_region
          %s350 = smul.u32 16, %s21
          %p351 = scmp.lt.s32.totalorder %s350, 31
          %s352 = scalar_select %p351, %s350, 31
          %s353 = smul.addr %s352, 8
          %s354 = scalar_lea.vmem %s0, %s353
          %s355 = smul.u32 16, %s21
        $region52: #{tpu_custom_call.1} parent=47 // pred_fallthru
          _
        // Predicated region
        $region53: #{tpu_custom_call.1} parent=47 // pred_check
          %p356 = pneg %p67
        $region54: #{tpu_custom_call.1} parent=47 // pred_check_branch
          %358 = sbr.rel (%p356) target = $region56
        $region55: #{tpu_custom_call.1} parent=47 // pred_region
          %s359 = smul.u32 16, %s21
          %p360 = scmp.lt.s32.totalorder %s359, 31
          %s361 = scalar_select %p360, %s359, 31
          %s362 = smul.addr %s361, 8
          %s363 = scalar_lea.vmem %s1, %s362
          %s364 = smul.u32 16, %s21
        $region56: #{tpu_custom_call.1} parent=47 // pred_fallthru
          _
        // Predicated region
        $region57: #{tpu_custom_call.1} parent=47 // pred_check
          %p365 = pneg %p93
        $region58: #{tpu_custom_call.1} parent=47 // pred_check_branch
          %367 = sbr.rel (%p365) target = $region60
        $region59: #{tpu_custom_call.1} parent=47 // pred_region
          %s368 = smul.u32 16, %s21
          %p369 = scmp.lt.s32.totalorder %s368, 31
          %s370 = scalar_select %p369, %s368, 31
          %s371 = smul.addr %s370, 8
          %s372 = scalar_lea.vmem %s2, %s371
          %s373 = smul.u32 16, %s21
        $region60: #{tpu_custom_call.1} parent=47 // pred_fallthru
          _
      $region48: #{tpu_custom_call.1} parent=5 // pred_fallthru
        _
      %p374 = scmp.le.s32.totalorder 1, %s21
      %p375 = scmp.lt.s32.totalorder %s21, 3
      %p376 = pnand %p374, %p375
      %p377 = pneg %p376
      // Predicated region
      $region61: #{tpu_custom_call.1} parent=5 // pred_check
        _
      $region62: #{tpu_custom_call.1} parent=5 // pred_check_branch
        %379 = sbr.rel (%p376) target = $region64
      $region63: #{tpu_custom_call.1} parent=5 // pred_region
        %s380 = ssub.s32 %s21, 1
        // Predicated region
        $region65: #{tpu_custom_call.1} parent=63 // pred_check
          %p381 = pneg %p162
        $region66: #{tpu_custom_call.1} parent=63 // pred_check_branch
          %383 = sbr.rel (%p381) target = $region68
        $region67: #{tpu_custom_call.1} parent=63 // pred_region
          %385 = dma.done [#allocation3], 12288
        $region68: #{tpu_custom_call.1} parent=63 // pred_fallthru
          _
        %s386 = smul.u32 16, %s26
        %p387 = scmp.lt.s32.totalorder %s386, 31
        %s388 = scalar_select %p387, %s386, 31
        %s389 = smul.addr %s388, 8
        %s390 = scalar_lea.vmem %s0, %s389
        %p391 = pneg %p47
        %p392 = pneg %p44
        %s393 = smul.u32 16, %s26
        %p394 = scmp.lt.s32.totalorder %s393, 31
        %s395 = scalar_select %p394, %s393, 31
        %s396 = smul.addr %s395, 8
        %s397 = scalar_lea.vmem %s1, %s396
        %p398 = pneg %p73
        %p399 = pneg %p70
        %s400 = smul.u32 16, %s26
        %p401 = scmp.lt.s32.totalorder %s400, 31
        %s402 = scalar_select %p401, %s400, 31
        %s403 = smul.addr %s402, 8
        %s404 = scalar_lea.vmem %s2, %s403
        %p405 = pneg %p99
        %p406 = pneg %p96
        %p407 = pneg %p120
        %p408 = pneg %p117
        %p409 = pneg %p141
        %p410 = pneg %p138
        %p411 = pneg %p162
        %p412 = pneg %p159
        %p413 = pneg %p183
        %p414 = pneg %p180
        %p415 = pneg %p204
        %p416 = pneg %p201
        %p417 = pneg %p225
        %p418 = pneg %p222
        %p419 = pneg %p246
        %p420 = pneg %p243
        %p421 = pneg %p267
        %p422 = pneg %p264
        %p423 = pneg %p293
        %p424 = pneg %p290
        %s425 = sand.u32 %s280, 1
        %s426 = scalar_lea.sflag [#allocation4], %s425
        %s427 = sand.u32 %s280, 1
        %s428 = smul.addr %s427, 256
        %s429 = scalar_lea.vmem [#allocation5], %s428
        %s430 = smul.u32 16, %s26
        %p431 = scmp.lt.s32.totalorder %s430, 31
        %s432 = scalar_select %p431, %s430, 31
        %s433 = smul.addr %s432, 8
        %s434 = scalar_lea.vmem %s0, %s433
        %s435 = smul.u32 16, %s26
        %s436 = smul.u32 16, %s26
        %p437 = scmp.lt.s32.totalorder %s436, 31
        %s438 = scalar_select %p437, %s436, 31
        %s439 = smul.addr %s438, 8
        %s440 = scalar_lea.vmem %s1, %s439
        %s441 = smul.u32 16, %s26
        %s442 = smul.u32 16, %s26
        %p443 = scmp.lt.s32.totalorder %s442, 31
        %s444 = scalar_select %p443, %s442, 31
        %s445 = smul.addr %s444, 8
        %s446 = scalar_lea.vmem %s2, %s445
        %s447 = smul.u32 16, %s26
        %s448 = smul.u32 16, %s26
        %v449 = vld [vmem:[%s434] sm:$0xff]
        %v450 = vld [vmem:[%s434 + $0x8] sm:$0xff]
        %v451 = vld [vmem:[%s434 + $0x10] sm:$0xff]
        %v452 = vld [vmem:[%s434 + $0x18] sm:$0xff]
        %v453 = vld [vmem:[%s434 + $0x20] sm:$0xff]
        %v454 = vld [vmem:[%s434 + $0x28] sm:$0xff]
        %v455 = vld [vmem:[%s434 + $0x30] sm:$0xff]
        %v456 = vld [vmem:[%s434 + $0x38] sm:$0xff]
        %v457 = vld [vmem:[%s434 + $0x40] sm:$0xff]
        %v458 = vld [vmem:[%s434 + $0x48] sm:$0xff]
        %v459 = vld [vmem:[%s434 + $0x50] sm:$0xff]
        %v460 = vld [vmem:[%s434 + $0x58] sm:$0xff]
        %v461 = vld [vmem:[%s434 + $0x60] sm:$0xff]
        %v462 = vld [vmem:[%s434 + $0x68] sm:$0xff]
        %v463 = vld [vmem:[%s434 + $0x70] sm:$0xff]
        %v464 = vld [vmem:[%s434 + $0x78] sm:$0xff]
        %v465 = vld [vmem:[%s440] sm:$0xff]
        %v466 = vld [vmem:[%s440 + $0x8] sm:$0xff]
        %v467 = vld [vmem:[%s440 + $0x10] sm:$0xff]
        %v468 = vld [vmem:[%s440 + $0x18] sm:$0xff]
        %v469 = vld [vmem:[%s440 + $0x20] sm:$0xff]
        %v470 = vld [vmem:[%s440 + $0x28] sm:$0xff]
        %v471 = vld [vmem:[%s440 + $0x30] sm:$0xff]
        %v472 = vld [vmem:[%s440 + $0x38] sm:$0xff]
        %v473 = vld [vmem:[%s440 + $0x40] sm:$0xff]
        %v474 = vld [vmem:[%s440 + $0x48] sm:$0xff]
        %v475 = vld [vmem:[%s440 + $0x50] sm:$0xff]
        %v476 = vld [vmem:[%s440 + $0x58] sm:$0xff]
        %v477 = vld [vmem:[%s440 + $0x60] sm:$0xff]
        %v478 = vld [vmem:[%s440 + $0x68] sm:$0xff]
        %v479 = vld [vmem:[%s440 + $0x70] sm:$0xff]
        %v480 = vld [vmem:[%s440 + $0x78] sm:$0xff]
        %v481 = vld [vmem:[%s3] sm:$0xff]
        %v482 = vld [vmem:[%s3 + $0x8] sm:$0xff]
        %v483 = vld [vmem:[%s4] sm:$0x1]
        %v485 = vperm.slane %v483, 0
        %vm487 = vcmask 130048
        %v489 = vsel %vm487, %v449, 0
        %v492 = vsel %vm487, %v450, 0
        %v495 = vsel %vm487, %v451, 0
        %v498 = vsel %vm487, %v452, 0
        %v501 = vsel %vm487, %v453, 0
        %v504 = vsel %vm487, %v454, 0
        %v507 = vsel %vm487, %v455, 0
        %v510 = vsel %vm487, %v456, 0
        %v513 = vsel %vm487, %v457, 0
        %v516 = vsel %vm487, %v458, 0
        %v519 = vsel %vm487, %v459, 0
        %v522 = vsel %vm487, %v460, 0
        %v525 = vsel %vm487, %v461, 0
        %v528 = vsel %vm487, %v462, 0
        %v531 = vsel %vm487, %v463, 0
        %v534 = vsel %vm487, %v464, 0
        %v537 = vsel %vm487, %v465, 0
        %v540 = vsel %vm487, %v466, 0
        %v543 = vsel %vm487, %v467, 0
        %v546 = vsel %vm487, %v468, 0
        %v549 = vsel %vm487, %v469, 0
        %v552 = vsel %vm487, %v470, 0
        %v555 = vsel %vm487, %v471, 0
        %v558 = vsel %vm487, %v472, 0
        %v561 = vsel %vm487, %v473, 0
        %v564 = vsel %vm487, %v474, 0
        %v567 = vsel %vm487, %v475, 0
        %v570 = vsel %vm487, %v476, 0
        %v573 = vsel %vm487, %v477, 0
        %v576 = vsel %vm487, %v478, 0
        %v579 = vsel %vm487, %v479, 0
        %v582 = vsel %vm487, %v480, 0
        %584 = vmatpush.msra.mxu0 0.0
        %585 = vmatpush.msra.mxu0 0.0
        %586 = vmatpush.msra.mxu0 0.0
        %587 = vmatpush.msra.mxu0 0.0
        %588 = vmatpush.msra.mxu0 0.0
        %589 = vmatpush.msra.mxu0 0.0
        %590 = vmatpush.msra.mxu0 0.0
        %591 = vmatpush.msra.mxu0 0.0
        %592 = vmatpush.msra.mxu0 0.0
        %593 = vmatpush.msra.mxu0 0.0
        %594 = vmatpush.msra.mxu0 0.0
        %595 = vmatpush.msra.mxu0 0.0
        %596 = vmatpush.msra.mxu0 0.0
        %597 = vmatpush.msra.mxu0 0.0
        %598 = vmatpush.msra.mxu0 %v482
        %599 = vmatpush.msra.mxu0 %v481
        %600 = vmatmul.f32.gmra.mxu0 %v489
        %v601 = vpop.f32.mrf.mxu0
        %v602 = vadd.f32 %v485, %v601
        %603 = vmatmul.f32.gmra.mxu0 %v492
        %v604 = vpop.f32.mrf.mxu0
        %v605 = vadd.f32 %v485, %v604
        %606 = vmatmul.f32.gmra.mxu0 %v495
        %v607 = vpop.f32.mrf.mxu0
        %v608 = vadd.f32 %v485, %v607
        %609 = vmatmul.f32.gmra.mxu0 %v498
        %v610 = vpop.f32.mrf.mxu0
        %v611 = vadd.f32 %v485, %v610
        %612 = vmatmul.f32.gmra.mxu0 %v501
        %v613 = vpop.f32.mrf.mxu0
        %v614 = vadd.f32 %v485, %v613
        %615 = vmatmul.f32.gmra.mxu0 %v504
        %v616 = vpop.f32.mrf.mxu0
        %v617 = vadd.f32 %v485, %v616
        %618 = vmatmul.f32.gmra.mxu0 %v507
        %v619 = vpop.f32.mrf.mxu0
        %v620 = vadd.f32 %v485, %v619
        %621 = vmatmul.f32.gmra.mxu0 %v510
        %v622 = vpop.f32.mrf.mxu0
        %v623 = vadd.f32 %v485, %v622
        %624 = vmatmul.f32.gmra.mxu0 %v513
        %v625 = vpop.f32.mrf.mxu0
        %v626 = vadd.f32 %v485, %v625
        %627 = vmatmul.f32.gmra.mxu0 %v516
        %v628 = vpop.f32.mrf.mxu0
        %v629 = vadd.f32 %v485, %v628
        %630 = vmatmul.f32.gmra.mxu0 %v519
        %v631 = vpop.f32.mrf.mxu0
        %v632 = vadd.f32 %v485, %v631
        %633 = vmatmul.f32.gmra.mxu0 %v522
        %v634 = vpop.f32.mrf.mxu0
        %v635 = vadd.f32 %v485, %v634
        %636 = vmatmul.f32.gmra.mxu0 %v525
        %v637 = vpop.f32.mrf.mxu0
        %v638 = vadd.f32 %v485, %v637
        %639 = vmatmul.f32.gmra.mxu0 %v528
        %v640 = vpop.f32.mrf.mxu0
        %v641 = vadd.f32 %v485, %v640
        %642 = vmatmul.f32.gmra.mxu0 %v531
        %v643 = vpop.f32.mrf.mxu0
        %v644 = vadd.f32 %v485, %v643
        %645 = vmatmul.f32.gmra.mxu0 %v534
        %v646 = vpop.f32.mrf.mxu0
        %v647 = vadd.f32 %v485, %v646
        %648 = vmatmul.f32.gmra.mxu0 %v537
        %v649 = vpop.f32.mrf.mxu0
        %v650 = vadd.f32 %v485, %v649
        %651 = vmatmul.f32.gmra.mxu0 %v540
        %v652 = vpop.f32.mrf.mxu0
        %v653 = vadd.f32 %v485, %v652
        %654 = vmatmul.f32.gmra.mxu0 %v543
        %v655 = vpop.f32.mrf.mxu0
        %v656 = vadd.f32 %v485, %v655
        %657 = vmatmul.f32.gmra.mxu0 %v546
        %v658 = vpop.f32.mrf.mxu0
        %v659 = vadd.f32 %v485, %v658
        %660 = vmatmul.f32.gmra.mxu0 %v549
        %v661 = vpop.f32.mrf.mxu0
        %v662 = vadd.f32 %v485, %v661
        %663 = vmatmul.f32.gmra.mxu0 %v552
        %v664 = vpop.f32.mrf.mxu0
        %v665 = vadd.f32 %v485, %v664
        %666 = vmatmul.f32.gmra.mxu0 %v555
        %v667 = vpop.f32.mrf.mxu0
        %v668 = vadd.f32 %v485, %v667
        %669 = vmatmul.f32.gmra.mxu0 %v558
        %v670 = vpop.f32.mrf.mxu0
        %v671 = vadd.f32 %v485, %v670
        %672 = vmatmul.f32.gmra.mxu0 %v561
        %v673 = vpop.f32.mrf.mxu0
        %v674 = vadd.f32 %v485, %v673
        %675 = vmatmul.f32.gmra.mxu0 %v564
        %v676 = vpop.f32.mrf.mxu0
        %v677 = vadd.f32 %v485, %v676
        %678 = vmatmul.f32.gmra.mxu0 %v567
        %v679 = vpop.f32.mrf.mxu0
        %v680 = vadd.f32 %v485, %v679
        %681 = vmatmul.f32.gmra.mxu0 %v570
        %v682 = vpop.f32.mrf.mxu0
        %v683 = vadd.f32 %v485, %v682
        %684 = vmatmul.f32.gmra.mxu0 %v573
        %v685 = vpop.f32.mrf.mxu0
        %v686 = vadd.f32 %v485, %v685
        %687 = vmatmul.f32.gmra.mxu0 %v576
        %v688 = vpop.f32.mrf.mxu0
        %v689 = vadd.f32 %v485, %v688
        %690 = vmatmul.f32.gmra.mxu0 %v579
        %v691 = vpop.f32.mrf.mxu0
        %v692 = vadd.f32 %v485, %v691
        %693 = vmatmul.f32.gmra.mxu0 %v582
        %v694 = vpop.f32.mrf.mxu0
        %v695 = vadd.f32 %v485, %v694
        %696 = vdwg.mxu0
        %v697 = vmax.f32 %v602, 0.0
        %v698 = vmax.f32 %v605, 0.0
        %v699 = vmax.f32 %v608, 0.0
        %v700 = vmax.f32 %v611, 0.0
        %v701 = vmax.f32 %v614, 0.0
        %v702 = vmax.f32 %v617, 0.0
        %v703 = vmax.f32 %v620, 0.0
        %v704 = vmax.f32 %v623, 0.0
        %v705 = vmax.f32 %v626, 0.0
        %v706 = vmax.f32 %v629, 0.0
        %v707 = vmax.f32 %v632, 0.0
        %v708 = vmax.f32 %v635, 0.0
        %v709 = vmax.f32 %v638, 0.0
        %v710 = vmax.f32 %v641, 0.0
        %v711 = vmax.f32 %v644, 0.0
        %v712 = vmax.f32 %v647, 0.0
        %v713 = vmax.f32 %v650, 0.0
        %v714 = vmax.f32 %v653, 0.0
        %v715 = vmax.f32 %v656, 0.0
        %v716 = vmax.f32 %v659, 0.0
        %v717 = vmax.f32 %v662, 0.0
        %v718 = vmax.f32 %v665, 0.0
        %v719 = vmax.f32 %v668, 0.0
        %v720 = vmax.f32 %v671, 0.0
        %v721 = vmax.f32 %v674, 0.0
        %v722 = vmax.f32 %v677, 0.0
        %v723 = vmax.f32 %v680, 0.0
        %v724 = vmax.f32 %v683, 0.0
        %v725 = vmax.f32 %v686, 0.0
        %v726 = vmax.f32 %v689, 0.0
        %v727 = vmax.f32 %v692, 0.0
        %v728 = vmax.f32 %v695, 0.0
        %v729 = vlaneseq
        %v730 = vand.u32 %v729, 127
        %v731 = vld [vmem:[%s446] sm:$0xff]
        %v732 = vld [vmem:[%s446 + $0x8] sm:$0xff]
        %v733 = vld [vmem:[%s446 + $0x10] sm:$0xff]
        %v734 = vld [vmem:[%s446 + $0x18] sm:$0xff]
        %v735 = vld [vmem:[%s446 + $0x20] sm:$0xff]
        %v736 = vld [vmem:[%s446 + $0x28] sm:$0xff]
        %v737 = vld [vmem:[%s446 + $0x30] sm:$0xff]
        %v738 = vld [vmem:[%s446 + $0x38] sm:$0xff]
        %v739 = vld [vmem:[%s446 + $0x40] sm:$0xff]
        %v740 = vld [vmem:[%s446 + $0x48] sm:$0xff]
        %v741 = vld [vmem:[%s446 + $0x50] sm:$0xff]
        %v742 = vld [vmem:[%s446 + $0x58] sm:$0xff]
        %v743 = vld [vmem:[%s446 + $0x60] sm:$0xff]
        %v744 = vld [vmem:[%s446 + $0x68] sm:$0xff]
        %v745 = vld [vmem:[%s446 + $0x70] sm:$0xff]
        %v746 = vld [vmem:[%s446 + $0x78] sm:$0xff]
        %747 = vset.pattern.permute.xlu0 0
        %748 = vperm.xlu0 %747, %v731
        %v749 = vpop.permute.xlu0 %748
        %750 = vset.pattern.permute.xlu0 0
        %751 = vperm.xlu0 %750, %v732
        %v752 = vpop.permute.xlu0 %751
        %753 = vset.pattern.permute.xlu0 0
        %754 = vperm.xlu0 %753, %v733
        %v755 = vpop.permute.xlu0 %754
        %756 = vset.pattern.permute.xlu0 0
        %757 = vperm.xlu0 %756, %v734
        %v758 = vpop.permute.xlu0 %757
        %759 = vset.pattern.permute.xlu0 0
        %760 = vperm.xlu0 %759, %v735
        %v761 = vpop.permute.xlu0 %760
        %762 = vset.pattern.permute.xlu0 0
        %763 = vperm.xlu0 %762, %v736
        %v764 = vpop.permute.xlu0 %763
        %765 = vset.pattern.permute.xlu0 0
        %766 = vperm.xlu0 %765, %v737
        %v767 = vpop.permute.xlu0 %766
        %768 = vset.pattern.permute.xlu0 0
        %769 = vperm.xlu0 %768, %v738
        %v770 = vpop.permute.xlu0 %769
        %771 = vset.pattern.permute.xlu0 0
        %772 = vperm.xlu0 %771, %v739
        %v773 = vpop.permute.xlu0 %772
        %774 = vset.pattern.permute.xlu0 0
        %775 = vperm.xlu0 %774, %v740
        %v776 = vpop.permute.xlu0 %775
        %777 = vset.pattern.permute.xlu0 0
        %778 = vperm.xlu0 %777, %v741
        %v779 = vpop.permute.xlu0 %778
        %780 = vset.pattern.permute.xlu0 0
        %781 = vperm.xlu0 %780, %v742
        %v782 = vpop.permute.xlu0 %781
        %783 = vset.pattern.permute.xlu0 0
        %784 = vperm.xlu0 %783, %v743
        %v785 = vpop.permute.xlu0 %784
        %786 = vset.pattern.permute.xlu0 0
        %787 = vperm.xlu0 %786, %v744
        %v788 = vpop.permute.xlu0 %787
        %789 = vset.pattern.permute.xlu0 0
        %790 = vperm.xlu0 %789, %v745
        %v791 = vpop.permute.xlu0 %790
        %792 = vset.pattern.permute.xlu0 0
        %793 = vperm.xlu0 %792, %v746
        %v794 = vpop.permute.xlu0 %793
        %vm795 = vcmp.eq.s32.totalorder %v730, %v749
        %vm796 = vcmp.eq.s32.totalorder %v730, %v752
        %vm797 = vcmp.eq.s32.totalorder %v730, %v755
        %vm798 = vcmp.eq.s32.totalorder %v730, %v758
        %vm799 = vcmp.eq.s32.totalorder %v730, %v761
        %vm800 = vcmp.eq.s32.totalorder %v730, %v764
        %vm801 = vcmp.eq.s32.totalorder %v730, %v767
        %vm802 = vcmp.eq.s32.totalorder %v730, %v770
        %vm803 = vcmp.eq.s32.totalorder %v730, %v773
        %vm804 = vcmp.eq.s32.totalorder %v730, %v776
        %vm805 = vcmp.eq.s32.totalorder %v730, %v779
        %vm806 = vcmp.eq.s32.totalorder %v730, %v782
        %vm807 = vcmp.eq.s32.totalorder %v730, %v785
        %vm808 = vcmp.eq.s32.totalorder %v730, %v788
        %vm809 = vcmp.eq.s32.totalorder %v730, %v791
        %vm810 = vcmp.eq.s32.totalorder %v730, %v794
        %v811 = vsel %vm795, 1, 0
        %v812 = vsel %vm796, 1, 0
        %v813 = vsel %vm797, 1, 0
        %v814 = vsel %vm798, 1, 0
        %v815 = vsel %vm799, 1, 0
        %v816 = vsel %vm800, 1, 0
        %v817 = vsel %vm801, 1, 0
        %v818 = vsel %vm802, 1, 0
        %v819 = vsel %vm803, 1, 0
        %v820 = vsel %vm804, 1, 0
        %v821 = vsel %vm805, 1, 0
        %v822 = vsel %vm806, 1, 0
        %v823 = vsel %vm807, 1, 0
        %v824 = vsel %vm808, 1, 0
        %v825 = vsel %vm809, 1, 0
        %v826 = vsel %vm810, 1, 0
        %v827 = vcvt.s32.f32 %v811
        %v828 = vcvt.s32.f32 %v812
        %v829 = vcvt.s32.f32 %v813
        %v830 = vcvt.s32.f32 %v814
        %v831 = vcvt.s32.f32 %v815
        %v832 = vcvt.s32.f32 %v816
        %v833 = vcvt.s32.f32 %v817
        %v834 = vcvt.s32.f32 %v818
        %v835 = vcvt.s32.f32 %v819
        %v836 = vcvt.s32.f32 %v820
        %v837 = vcvt.s32.f32 %v821
        %v838 = vcvt.s32.f32 %v822
        %v839 = vcvt.s32.f32 %v823
        %v840 = vcvt.s32.f32 %v824
        %v841 = vcvt.s32.f32 %v825
        %v842 = vcvt.s32.f32 %v826
        %v843 = vld [vmem:[#allocation2] sm:$0xff]
        %v844 = vld [vmem:[#allocation2 + $0x8] sm:$0xff]
        %v845 = vld [vmem:[#allocation2 + $0x10] sm:$0xff]
        %v846 = vld [vmem:[#allocation2 + $0x18] sm:$0xff]
        %v847 = vld [vmem:[#allocation2 + $0x20] sm:$0xff]
        %v848 = vld [vmem:[#allocation2 + $0x28] sm:$0xff]
        %v849 = vld [vmem:[#allocation2 + $0x30] sm:$0xff]
        %v850 = vld [vmem:[#allocation2 + $0x38] sm:$0xff]
        %v851 = vld [vmem:[#allocation2 + $0x40] sm:$0xff]
        %v852 = vld [vmem:[#allocation2 + $0x48] sm:$0xff]
        %v853 = vld [vmem:[#allocation2 + $0x50] sm:$0xff]
        %v854 = vld [vmem:[#allocation2 + $0x58] sm:$0xff]
        %v855 = vld [vmem:[#allocation2 + $0x60] sm:$0xff]
        %v856 = vld [vmem:[#allocation2 + $0x68] sm:$0xff]
        %v857 = vld [vmem:[#allocation2 + $0x70] sm:$0xff]
        %v858 = vld [vmem:[#allocation2 + $0x78] sm:$0xff]
        %v859 = vld [vmem:[#allocation2 + $0x80] sm:$0xff]
        %v860 = vld [vmem:[#allocation2 + $0x88] sm:$0xff]
        %v861 = vld [vmem:[#allocation2 + $0x90] sm:$0xff]
        %v862 = vld [vmem:[#allocation2 + $0x98] sm:$0xff]
        %v863 = vld [vmem:[#allocation2 + $0xa0] sm:$0xff]
        %v864 = vld [vmem:[#allocation2 + $0xa8] sm:$0xff]
        %v865 = vld [vmem:[#allocation2 + $0xb0] sm:$0xff]
        %v866 = vld [vmem:[#allocation2 + $0xb8] sm:$0xff]
        %v867 = vld [vmem:[#allocation2 + $0xc0] sm:$0xff]
        %v868 = vld [vmem:[#allocation2 + $0xc8] sm:$0xff]
        %v869 = vld [vmem:[#allocation2 + $0xd0] sm:$0xff]
        %v870 = vld [vmem:[#allocation2 + $0xd8] sm:$0xff]
        %v871 = vld [vmem:[#allocation2 + $0xe0] sm:$0xff]
        %v872 = vld [vmem:[#allocation2 + $0xe8] sm:$0xff]
        %v873 = vld [vmem:[#allocation2 + $0xf0] sm:$0xff]
        %v874 = vld [vmem:[#allocation2 + $0xf8] sm:$0xff]
        %v875 = vld [vmem:[#allocation2 + $0x100] sm:$0xff]
        %v876 = vld [vmem:[#allocation2 + $0x108] sm:$0xff]
        %v877 = vld [vmem:[#allocation2 + $0x110] sm:$0xff]
        %v878 = vld [vmem:[#allocation2 + $0x118] sm:$0xff]
        %v879 = vld [vmem:[#allocation2 + $0x120] sm:$0xff]
        %v880 = vld [vmem:[#allocation2 + $0x128] sm:$0xff]
        %v881 = vld [vmem:[#allocation2 + $0x130] sm:$0xff]
        %v882 = vld [vmem:[#allocation2 + $0x138] sm:$0xff]
        %v883 = vld [vmem:[#allocation2 + $0x140] sm:$0xff]
        %v884 = vld [vmem:[#allocation2 + $0x148] sm:$0xff]
        %v885 = vld [vmem:[#allocation2 + $0x150] sm:$0xff]
        %v886 = vld [vmem:[#allocation2 + $0x158] sm:$0xff]
        %v887 = vld [vmem:[#allocation2 + $0x160] sm:$0xff]
        %v888 = vld [vmem:[#allocation2 + $0x168] sm:$0xff]
        %v889 = vld [vmem:[#allocation2 + $0x170] sm:$0xff]
        %v890 = vld [vmem:[#allocation2 + $0x178] sm:$0xff]
        %v891 = vld [vmem:[#allocation2 + $0x180] sm:$0xff]
        %v892 = vld [vmem:[#allocation2 + $0x188] sm:$0xff]
        %v893 = vld [vmem:[#allocation2 + $0x190] sm:$0xff]
        %v894 = vld [vmem:[#allocation2 + $0x198] sm:$0xff]
        %v895 = vld [vmem:[#allocation2 + $0x1a0] sm:$0xff]
        %v896 = vld [vmem:[#allocation2 + $0x1a8] sm:$0xff]
        %v897 = vld [vmem:[#allocation2 + $0x1b0] sm:$0xff]
        %v898 = vld [vmem:[#allocation2 + $0x1b8] sm:$0xff]
        %v899 = vld [vmem:[#allocation2 + $0x1c0] sm:$0xff]
        %v900 = vld [vmem:[#allocation2 + $0x1c8] sm:$0xff]
        %v901 = vld [vmem:[#allocation2 + $0x1d0] sm:$0xff]
        %v902 = vld [vmem:[#allocation2 + $0x1d8] sm:$0xff]
        %v903 = vld [vmem:[#allocation2 + $0x1e0] sm:$0xff]
        %v904 = vld [vmem:[#allocation2 + $0x1e8] sm:$0xff]
        %v905 = vld [vmem:[#allocation2 + $0x1f0] sm:$0xff]
        %v906 = vld [vmem:[#allocation2 + $0x1f8] sm:$0xff]
        %v907 = vld [vmem:[#allocation2 + $0x200] sm:$0xff]
        %v908 = vld [vmem:[#allocation2 + $0x208] sm:$0xff]
        %v909 = vld [vmem:[#allocation2 + $0x210] sm:$0xff]
        %v910 = vld [vmem:[#allocation2 + $0x218] sm:$0xff]
        %v911 = vld [vmem:[#allocation2 + $0x220] sm:$0xff]
        %v912 = vld [vmem:[#allocation2 + $0x228] sm:$0xff]
        %v913 = vld [vmem:[#allocation2 + $0x230] sm:$0xff]
        %v914 = vld [vmem:[#allocation2 + $0x238] sm:$0xff]
        %v915 = vld [vmem:[#allocation2 + $0x240] sm:$0xff]
        %v916 = vld [vmem:[#allocation2 + $0x248] sm:$0xff]
        %v917 = vld [vmem:[#allocation2 + $0x250] sm:$0xff]
        %v918 = vld [vmem:[#allocation2 + $0x258] sm:$0xff]
        %v919 = vld [vmem:[#allocation2 + $0x260] sm:$0xff]
        %v920 = vld [vmem:[#allocation2 + $0x268] sm:$0xff]
        %v921 = vld [vmem:[#allocation2 + $0x270] sm:$0xff]
        %v922 = vld [vmem:[#allocation2 + $0x278] sm:$0xff]
        %v923 = vld [vmem:[#allocation2 + $0x280] sm:$0xff]
        %v924 = vld [vmem:[#allocation2 + $0x288] sm:$0xff]
        %v925 = vld [vmem:[#allocation2 + $0x290] sm:$0xff]
        %v926 = vld [vmem:[#allocation2 + $0x298] sm:$0xff]
        %v927 = vld [vmem:[#allocation2 + $0x2a0] sm:$0xff]
        %v928 = vld [vmem:[#allocation2 + $0x2a8] sm:$0xff]
        %v929 = vld [vmem:[#allocation2 + $0x2b0] sm:$0xff]
        %v930 = vld [vmem:[#allocation2 + $0x2b8] sm:$0xff]
        %v931 = vld [vmem:[#allocation2 + $0x2c0] sm:$0xff]
        %v932 = vld [vmem:[#allocation2 + $0x2c8] sm:$0xff]
        %v933 = vld [vmem:[#allocation2 + $0x2d0] sm:$0xff]
        %v934 = vld [vmem:[#allocation2 + $0x2d8] sm:$0xff]
        %v935 = vld [vmem:[#allocation2 + $0x2e0] sm:$0xff]
        %v936 = vld [vmem:[#allocation2 + $0x2e8] sm:$0xff]
        %v937 = vld [vmem:[#allocation2 + $0x2f0] sm:$0xff]
        %v938 = vld [vmem:[#allocation2 + $0x2f8] sm:$0xff]
        %v939 = vld [vmem:[%s6] sm:$0x3]
        %v941 = vperm.slane %v939, 0
        %v942 = vperm.slane %v939, 1
        %945 = vmatpush.msra.mxu0 %v873
        %946 = vmatpush.msra.mxu0 %v871
        %947 = vmatpush.msra.mxu0 %v869
        %948 = vmatpush.msra.mxu0 %v867
        %949 = vmatpush.msra.mxu0 %v865
        %950 = vmatpush.msra.mxu0 %v863
        %951 = vmatpush.msra.mxu0 %v861
        %952 = vmatpush.msra.mxu0 %v859
        %953 = vmatpush.msra.mxu0 %v857
        %954 = vmatpush.msra.mxu0 %v855
        %955 = vmatpush.msra.mxu0 %v853
        %956 = vmatpush.msra.mxu0 %v851
        %957 = vmatpush.msra.mxu0 %v849
        %958 = vmatpush.msra.mxu0 %v847
        %959 = vmatpush.msra.mxu0 %v845
        %960 = vmatpush.msra.mxu0 %v843
        %961 = vmatmul.f32.gmra.mxu0 %v697
        %v962 = vpop.f32.mrf.mxu0
        %v963 = vadd.f32 %v941, %v962
        %964 = vmatmul.f32.gmra.mxu0 %v698
        %v965 = vpop.f32.mrf.mxu0
        %v966 = vadd.f32 %v941, %v965
        %967 = vmatmul.f32.gmra.mxu0 %v699
        %v968 = vpop.f32.mrf.mxu0
        %v969 = vadd.f32 %v941, %v968
        %970 = vmatmul.f32.gmra.mxu0 %v700
        %v971 = vpop.f32.mrf.mxu0
        %v972 = vadd.f32 %v941, %v971
        %973 = vmatmul.f32.gmra.mxu0 %v701
        %v974 = vpop.f32.mrf.mxu0
        %v975 = vadd.f32 %v941, %v974
        %976 = vmatmul.f32.gmra.mxu0 %v702
        %v977 = vpop.f32.mrf.mxu0
        %v978 = vadd.f32 %v941, %v977
        %979 = vmatmul.f32.gmra.mxu0 %v703
        %v980 = vpop.f32.mrf.mxu0
        %v981 = vadd.f32 %v941, %v980
        %982 = vmatmul.f32.gmra.mxu0 %v704
        %v983 = vpop.f32.mrf.mxu0
        %v984 = vadd.f32 %v941, %v983
        %985 = vmatmul.f32.gmra.mxu0 %v705
        %v986 = vpop.f32.mrf.mxu0
        %v987 = vadd.f32 %v941, %v986
        %988 = vmatmul.f32.gmra.mxu0 %v706
        %v989 = vpop.f32.mrf.mxu0
        %v990 = vadd.f32 %v941, %v989
        %991 = vmatmul.f32.gmra.mxu0 %v707
        %v992 = vpop.f32.mrf.mxu0
        %v993 = vadd.f32 %v941, %v992
        %994 = vmatmul.f32.gmra.mxu0 %v708
        %v995 = vpop.f32.mrf.mxu0
        %v996 = vadd.f32 %v941, %v995
        %997 = vmatmul.f32.gmra.mxu0 %v709
        %v998 = vpop.f32.mrf.mxu0
        %v999 = vadd.f32 %v941, %v998
        %1000 = vmatmul.f32.gmra.mxu0 %v710
        %v1001 = vpop.f32.mrf.mxu0
        %v1002 = vadd.f32 %v941, %v1001
        %1003 = vmatmul.f32.gmra.mxu0 %v711
        %v1004 = vpop.f32.mrf.mxu0
        %v1005 = vadd.f32 %v941, %v1004
        %1006 = vmatmul.f32.gmra.mxu0 %v712
        %v1007 = vpop.f32.mrf.mxu0
        %v1008 = vadd.f32 %v941, %v1007
        %1009 = vdwg.mxu0
        %1010 = vmatpush.msra.mxu0 %v905
        %1011 = vmatpush.msra.mxu0 %v903
        %1012 = vmatpush.msra.mxu0 %v901
        %1013 = vmatpush.msra.mxu0 %v899
        %1014 = vmatpush.msra.mxu0 %v897
        %1015 = vmatpush.msra.mxu0 %v895
        %1016 = vmatpush.msra.mxu0 %v893
        %1017 = vmatpush.msra.mxu0 %v891
        %1018 = vmatpush.msra.mxu0 %v889
        %1019 = vmatpush.msra.mxu0 %v887
        %1020 = vmatpush.msra.mxu0 %v885
        %1021 = vmatpush.msra.mxu0 %v883
        %1022 = vmatpush.msra.mxu0 %v881
        %1023 = vmatpush.msra.mxu0 %v879
        %1024 = vmatpush.msra.mxu0 %v877
        %1025 = vmatpush.msra.mxu0 %v875
        %1026 = vmatmul.f32.gmra.mxu0 %v827
        %v1027 = vpop.f32.mrf.mxu0
        %v1028 = vadd.f32 %v963, %v1027
        %1029 = vmatmul.f32.gmra.mxu0 %v828
        %v1030 = vpop.f32.mrf.mxu0
        %v1031 = vadd.f32 %v966, %v1030
        %1032 = vmatmul.f32.gmra.mxu0 %v829
        %v1033 = vpop.f32.mrf.mxu0
        %v1034 = vadd.f32 %v969, %v1033
        %1035 = vmatmul.f32.gmra.mxu0 %v830
        %v1036 = vpop.f32.mrf.mxu0
        %v1037 = vadd.f32 %v972, %v1036
        %1038 = vmatmul.f32.gmra.mxu0 %v831
        %v1039 = vpop.f32.mrf.mxu0
        %v1040 = vadd.f32 %v975, %v1039
        %1041 = vmatmul.f32.gmra.mxu0 %v832
        %v1042 = vpop.f32.mrf.mxu0
        %v1043 = vadd.f32 %v978, %v1042
        %1044 = vmatmul.f32.gmra.mxu0 %v833
        %v1045 = vpop.f32.mrf.mxu0
        %v1046 = vadd.f32 %v981, %v1045
        %1047 = vmatmul.f32.gmra.mxu0 %v834
        %v1048 = vpop.f32.mrf.mxu0
        %v1049 = vadd.f32 %v984, %v1048
        %1050 = vmatmul.f32.gmra.mxu0 %v835
        %v1051 = vpop.f32.mrf.mxu0
        %v1052 = vadd.f32 %v987, %v1051
        %1053 = vmatmul.f32.gmra.mxu0 %v836
        %v1054 = vpop.f32.mrf.mxu0
        %v1055 = vadd.f32 %v990, %v1054
        %1056 = vmatmul.f32.gmra.mxu0 %v837
        %v1057 = vpop.f32.mrf.mxu0
        %v1058 = vadd.f32 %v993, %v1057
        %1059 = vmatmul.f32.gmra.mxu0 %v838
        %v1060 = vpop.f32.mrf.mxu0
        %v1061 = vadd.f32 %v996, %v1060
        %1062 = vmatmul.f32.gmra.mxu0 %v839
        %v1063 = vpop.f32.mrf.mxu0
        %v1064 = vadd.f32 %v999, %v1063
        %1065 = vmatmul.f32.gmra.mxu0 %v840
        %v1066 = vpop.f32.mrf.mxu0
        %v1067 = vadd.f32 %v1002, %v1066
        %1068 = vmatmul.f32.gmra.mxu0 %v841
        %v1069 = vpop.f32.mrf.mxu0
        %v1070 = vadd.f32 %v1005, %v1069
        %1071 = vmatmul.f32.gmra.mxu0 %v842
        %v1072 = vpop.f32.mrf.mxu0
        %v1073 = vadd.f32 %v1008, %v1072
        %1074 = vdwg.mxu0
        %1075 = vmatpush.msra.mxu0 %v937
        %1076 = vmatpush.msra.mxu0 %v935
        %1077 = vmatpush.msra.mxu0 %v933
        %1078 = vmatpush.msra.mxu0 %v931
        %1079 = vmatpush.msra.mxu0 %v929
        %1080 = vmatpush.msra.mxu0 %v927
        %1081 = vmatpush.msra.mxu0 %v925
        %1082 = vmatpush.msra.mxu0 %v923
        %1083 = vmatpush.msra.mxu0 %v921
        %1084 = vmatpush.msra.mxu0 %v919
        %1085 = vmatpush.msra.mxu0 %v917
        %1086 = vmatpush.msra.mxu0 %v915
        %1087 = vmatpush.msra.mxu0 %v913
        %1088 = vmatpush.msra.mxu0 %v911
        %1089 = vmatpush.msra.mxu0 %v909
        %1090 = vmatpush.msra.mxu0 %v907
        %1091 = vmatmul.f32.gmra.mxu0 %v713
        %v1092 = vpop.f32.mrf.mxu0
        %v1093 = vadd.f32 %v1028, %v1092
        %1094 = vmatmul.f32.gmra.mxu0 %v714
        %v1095 = vpop.f32.mrf.mxu0
        %v1096 = vadd.f32 %v1031, %v1095
        %1097 = vmatmul.f32.gmra.mxu0 %v715
        %v1098 = vpop.f32.mrf.mxu0
        %v1099 = vadd.f32 %v1034, %v1098
        %1100 = vmatmul.f32.gmra.mxu0 %v716
        %v1101 = vpop.f32.mrf.mxu0
        %v1102 = vadd.f32 %v1037, %v1101
        %1103 = vmatmul.f32.gmra.mxu0 %v717
        %v1104 = vpop.f32.mrf.mxu0
        %v1105 = vadd.f32 %v1040, %v1104
        %1106 = vmatmul.f32.gmra.mxu0 %v718
        %v1107 = vpop.f32.mrf.mxu0
        %v1108 = vadd.f32 %v1043, %v1107
        %1109 = vmatmul.f32.gmra.mxu0 %v719
        %v1110 = vpop.f32.mrf.mxu0
        %v1111 = vadd.f32 %v1046, %v1110
        %1112 = vmatmul.f32.gmra.mxu0 %v720
        %v1113 = vpop.f32.mrf.mxu0
        %v1114 = vadd.f32 %v1049, %v1113
        %1115 = vmatmul.f32.gmra.mxu0 %v721
        %v1116 = vpop.f32.mrf.mxu0
        %v1117 = vadd.f32 %v1052, %v1116
        %1118 = vmatmul.f32.gmra.mxu0 %v722
        %v1119 = vpop.f32.mrf.mxu0
        %v1120 = vadd.f32 %v1055, %v1119
        %1121 = vmatmul.f32.gmra.mxu0 %v723
        %v1122 = vpop.f32.mrf.mxu0
        %v1123 = vadd.f32 %v1058, %v1122
        %1124 = vmatmul.f32.gmra.mxu0 %v724
        %v1125 = vpop.f32.mrf.mxu0
        %v1126 = vadd.f32 %v1061, %v1125
        %1127 = vmatmul.f32.gmra.mxu0 %v725
        %v1128 = vpop.f32.mrf.mxu0
        %v1129 = vadd.f32 %v1064, %v1128
        %1130 = vmatmul.f32.gmra.mxu0 %v726
        %v1131 = vpop.f32.mrf.mxu0
        %v1132 = vadd.f32 %v1067, %v1131
        %1133 = vmatmul.f32.gmra.mxu0 %v727
        %v1134 = vpop.f32.mrf.mxu0
        %v1135 = vadd.f32 %v1070, %v1134
        %1136 = vmatmul.f32.gmra.mxu0 %v728
        %v1137 = vpop.f32.mrf.mxu0
        %v1138 = vadd.f32 %v1073, %v1137
        %1139 = vdwg.mxu0
        %1140 = vmatpush.msra.mxu0 %v874
        %1141 = vmatpush.msra.mxu0 %v872
        %1142 = vmatpush.msra.mxu0 %v870
        %1143 = vmatpush.msra.mxu0 %v868
        %1144 = vmatpush.msra.mxu0 %v866
        %1145 = vmatpush.msra.mxu0 %v864
        %1146 = vmatpush.msra.mxu0 %v862
        %1147 = vmatpush.msra.mxu0 %v860
        %1148 = vmatpush.msra.mxu0 %v858
        %1149 = vmatpush.msra.mxu0 %v856
        %1150 = vmatpush.msra.mxu0 %v854
        %1151 = vmatpush.msra.mxu0 %v852
        %1152 = vmatpush.msra.mxu0 %v850
        %1153 = vmatpush.msra.mxu0 %v848
        %1154 = vmatpush.msra.mxu0 %v846
        %1155 = vmatpush.msra.mxu0 %v844
        %1156 = vmatmul.f32.gmra.mxu0 %v697
        %v1157 = vpop.f32.mrf.mxu0
        %v1158 = vadd.f32 %v942, %v1157
        %1159 = vmatmul.f32.gmra.mxu0 %v698
        %v1160 = vpop.f32.mrf.mxu0
        %v1161 = vadd.f32 %v942, %v1160
        %1162 = vmatmul.f32.gmra.mxu0 %v699
        %v1163 = vpop.f32.mrf.mxu0
        %v1164 = vadd.f32 %v942, %v1163
        %1165 = vmatmul.f32.gmra.mxu0 %v700
        %v1166 = vpop.f32.mrf.mxu0
        %v1167 = vadd.f32 %v942, %v1166
        %1168 = vmatmul.f32.gmra.mxu0 %v701
        %v1169 = vpop.f32.mrf.mxu0
        %v1170 = vadd.f32 %v942, %v1169
        %1171 = vmatmul.f32.gmra.mxu0 %v702
        %v1172 = vpop.f32.mrf.mxu0
        %v1173 = vadd.f32 %v942, %v1172
        %1174 = vmatmul.f32.gmra.mxu0 %v703
        %v1175 = vpop.f32.mrf.mxu0
        %v1176 = vadd.f32 %v942, %v1175
        %1177 = vmatmul.f32.gmra.mxu0 %v704
        %v1178 = vpop.f32.mrf.mxu0
        %v1179 = vadd.f32 %v942, %v1178
        %1180 = vmatmul.f32.gmra.mxu0 %v705
        %v1181 = vpop.f32.mrf.mxu0
        %v1182 = vadd.f32 %v942, %v1181
        %1183 = vmatmul.f32.gmra.mxu0 %v706
        %v1184 = vpop.f32.mrf.mxu0
        %v1185 = vadd.f32 %v942, %v1184
        %1186 = vmatmul.f32.gmra.mxu0 %v707
        %v1187 = vpop.f32.mrf.mxu0
        %v1188 = vadd.f32 %v942, %v1187
        %1189 = vmatmul.f32.gmra.mxu0 %v708
        %v1190 = vpop.f32.mrf.mxu0
        %v1191 = vadd.f32 %v942, %v1190
        %1192 = vmatmul.f32.gmra.mxu0 %v709
        %v1193 = vpop.f32.mrf.mxu0
        %v1194 = vadd.f32 %v942, %v1193
        %1195 = vmatmul.f32.gmra.mxu0 %v710
        %v1196 = vpop.f32.mrf.mxu0
        %v1197 = vadd.f32 %v942, %v1196
        %1198 = vmatmul.f32.gmra.mxu0 %v711
        %v1199 = vpop.f32.mrf.mxu0
        %v1200 = vadd.f32 %v942, %v1199
        %1201 = vmatmul.f32.gmra.mxu0 %v712
        %v1202 = vpop.f32.mrf.mxu0
        %v1203 = vadd.f32 %v942, %v1202
        %1204 = vdwg.mxu0
        %1205 = vmatpush.msra.mxu0 %v906
        %1206 = vmatpush.msra.mxu0 %v904
        %1207 = vmatpush.msra.mxu0 %v902
        %1208 = vmatpush.msra.mxu0 %v900
        %1209 = vmatpush.msra.mxu0 %v898
        %1210 = vmatpush.msra.mxu0 %v896
        %1211 = vmatpush.msra.mxu0 %v894
        %1212 = vmatpush.msra.mxu0 %v892
        %1213 = vmatpush.msra.mxu0 %v890
        %1214 = vmatpush.msra.mxu0 %v888
        %1215 = vmatpush.msra.mxu0 %v886
        %1216 = vmatpush.msra.mxu0 %v884
        %1217 = vmatpush.msra.mxu0 %v882
        %1218 = vmatpush.msra.mxu0 %v880
        %1219 = vmatpush.msra.mxu0 %v878
        %1220 = vmatpush.msra.mxu0 %v876
        %1221 = vmatmul.f32.gmra.mxu0 %v827
        %v1222 = vpop.f32.mrf.mxu0
        %v1223 = vadd.f32 %v1158, %v1222
        %1224 = vmatmul.f32.gmra.mxu0 %v828
        %v1225 = vpop.f32.mrf.mxu0
        %v1226 = vadd.f32 %v1161, %v1225
        %1227 = vmatmul.f32.gmra.mxu0 %v829
        %v1228 = vpop.f32.mrf.mxu0
        %v1229 = vadd.f32 %v1164, %v1228
        %1230 = vmatmul.f32.gmra.mxu0 %v830
        %v1231 = vpop.f32.mrf.mxu0
        %v1232 = vadd.f32 %v1167, %v1231
        %1233 = vmatmul.f32.gmra.mxu0 %v831
        %v1234 = vpop.f32.mrf.mxu0
        %v1235 = vadd.f32 %v1170, %v1234
        %1236 = vmatmul.f32.gmra.mxu0 %v832
        %v1237 = vpop.f32.mrf.mxu0
        %v1238 = vadd.f32 %v1173, %v1237
        %1239 = vmatmul.f32.gmra.mxu0 %v833
        %v1240 = vpop.f32.mrf.mxu0
        %v1241 = vadd.f32 %v1176, %v1240
        %1242 = vmatmul.f32.gmra.mxu0 %v834
        %v1243 = vpop.f32.mrf.mxu0
        %v1244 = vadd.f32 %v1179, %v1243
        %1245 = vmatmul.f32.gmra.mxu0 %v835
        %v1246 = vpop.f32.mrf.mxu0
        %v1247 = vadd.f32 %v1182, %v1246
        %1248 = vmatmul.f32.gmra.mxu0 %v836
        %v1249 = vpop.f32.mrf.mxu0
        %v1250 = vadd.f32 %v1185, %v1249
        %1251 = vmatmul.f32.gmra.mxu0 %v837
        %v1252 = vpop.f32.mrf.mxu0
        %v1253 = vadd.f32 %v1188, %v1252
        %1254 = vmatmul.f32.gmra.mxu0 %v838
        %v1255 = vpop.f32.mrf.mxu0
        %v1256 = vadd.f32 %v1191, %v1255
        %1257 = vmatmul.f32.gmra.mxu0 %v839
        %v1258 = vpop.f32.mrf.mxu0
        %v1259 = vadd.f32 %v1194, %v1258
        %1260 = vmatmul.f32.gmra.mxu0 %v840
        %v1261 = vpop.f32.mrf.mxu0
        %v1262 = vadd.f32 %v1197, %v1261
        %1263 = vmatmul.f32.gmra.mxu0 %v841
        %v1264 = vpop.f32.mrf.mxu0
        %v1265 = vadd.f32 %v1200, %v1264
        %1266 = vmatmul.f32.gmra.mxu0 %v842
        %v1267 = vpop.f32.mrf.mxu0
        %v1268 = vadd.f32 %v1203, %v1267
        %1269 = vdwg.mxu0
        %1270 = vmatpush.msra.mxu0 %v938
        %1271 = vmatpush.msra.mxu0 %v936
        %1272 = vmatpush.msra.mxu0 %v934
        %1273 = vmatpush.msra.mxu0 %v932
        %1274 = vmatpush.msra.mxu0 %v930
        %1275 = vmatpush.msra.mxu0 %v928
        %1276 = vmatpush.msra.mxu0 %v926
        %1277 = vmatpush.msra.mxu0 %v924
        %1278 = vmatpush.msra.mxu0 %v922
        %1279 = vmatpush.msra.mxu0 %v920
        %1280 = vmatpush.msra.mxu0 %v918
        %1281 = vmatpush.msra.mxu0 %v916
        %1282 = vmatpush.msra.mxu0 %v914
        %1283 = vmatpush.msra.mxu0 %v912
        %1284 = vmatpush.msra.mxu0 %v910
        %1285 = vmatpush.msra.mxu0 %v908
        %1286 = vmatmul.f32.gmra.mxu0 %v713
        %v1287 = vpop.f32.mrf.mxu0
        %v1288 = vadd.f32 %v1223, %v1287
        %1289 = vmatmul.f32.gmra.mxu0 %v714
        %v1290 = vpop.f32.mrf.mxu0
        %v1291 = vadd.f32 %v1226, %v1290
        %1292 = vmatmul.f32.gmra.mxu0 %v715
        %v1293 = vpop.f32.mrf.mxu0
        %v1294 = vadd.f32 %v1229, %v1293
        %1295 = vmatmul.f32.gmra.mxu0 %v716
        %v1296 = vpop.f32.mrf.mxu0
        %v1297 = vadd.f32 %v1232, %v1296
        %1298 = vmatmul.f32.gmra.mxu0 %v717
        %v1299 = vpop.f32.mrf.mxu0
        %v1300 = vadd.f32 %v1235, %v1299
        %1301 = vmatmul.f32.gmra.mxu0 %v718
        %v1302 = vpop.f32.mrf.mxu0
        %v1303 = vadd.f32 %v1238, %v1302
        %1304 = vmatmul.f32.gmra.mxu0 %v719
        %v1305 = vpop.f32.mrf.mxu0
        %v1306 = vadd.f32 %v1241, %v1305
        %1307 = vmatmul.f32.gmra.mxu0 %v720
        %v1308 = vpop.f32.mrf.mxu0
        %v1309 = vadd.f32 %v1244, %v1308
        %1310 = vmatmul.f32.gmra.mxu0 %v721
        %v1311 = vpop.f32.mrf.mxu0
        %v1312 = vadd.f32 %v1247, %v1311
        %1313 = vmatmul.f32.gmra.mxu0 %v722
        %v1314 = vpop.f32.mrf.mxu0
        %v1315 = vadd.f32 %v1250, %v1314
        %1316 = vmatmul.f32.gmra.mxu0 %v723
        %v1317 = vpop.f32.mrf.mxu0
        %v1318 = vadd.f32 %v1253, %v1317
        %1319 = vmatmul.f32.gmra.mxu0 %v724
        %v1320 = vpop.f32.mrf.mxu0
        %v1321 = vadd.f32 %v1256, %v1320
        %1322 = vmatmul.f32.gmra.mxu0 %v725
        %v1323 = vpop.f32.mrf.mxu0
        %v1324 = vadd.f32 %v1259, %v1323
        %1325 = vmatmul.f32.gmra.mxu0 %v726
        %v1326 = vpop.f32.mrf.mxu0
        %v1327 = vadd.f32 %v1262, %v1326
        %1328 = vmatmul.f32.gmra.mxu0 %v727
        %v1329 = vpop.f32.mrf.mxu0
        %v1330 = vadd.f32 %v1265, %v1329
        %1331 = vmatmul.f32.gmra.mxu0 %v728
        %v1332 = vpop.f32.mrf.mxu0
        %v1333 = vadd.f32 %v1268, %v1332
        %1334 = vdwg.mxu0
        %v1335 = vmax.f32 %v1093, 0.0
        %v1336 = vmax.f32 %v1288, 0.0
        %v1337 = vmax.f32 %v1096, 0.0
        %v1338 = vmax.f32 %v1291, 0.0
        %v1339 = vmax.f32 %v1099, 0.0
        %v1340 = vmax.f32 %v1294, 0.0
        %v1341 = vmax.f32 %v1102, 0.0
        %v1342 = vmax.f32 %v1297, 0.0
        %v1343 = vmax.f32 %v1105, 0.0
        %v1344 = vmax.f32 %v1300, 0.0
        %v1345 = vmax.f32 %v1108, 0.0
        %v1346 = vmax.f32 %v1303, 0.0
        %v1347 = vmax.f32 %v1111, 0.0
        %v1348 = vmax.f32 %v1306, 0.0
        %v1349 = vmax.f32 %v1114, 0.0
        %v1350 = vmax.f32 %v1309, 0.0
        %v1351 = vmax.f32 %v1117, 0.0
        %v1352 = vmax.f32 %v1312, 0.0
        %v1353 = vmax.f32 %v1120, 0.0
        %v1354 = vmax.f32 %v1315, 0.0
        %v1355 = vmax.f32 %v1123, 0.0
        %v1356 = vmax.f32 %v1318, 0.0
        %v1357 = vmax.f32 %v1126, 0.0
        %v1358 = vmax.f32 %v1321, 0.0
        %v1359 = vmax.f32 %v1129, 0.0
        %v1360 = vmax.f32 %v1324, 0.0
        %v1361 = vmax.f32 %v1132, 0.0
        %v1362 = vmax.f32 %v1327, 0.0
        %v1363 = vmax.f32 %v1135, 0.0
        %v1364 = vmax.f32 %v1330, 0.0
        %v1365 = vmax.f32 %v1138, 0.0
        %v1366 = vmax.f32 %v1333, 0.0
        %v1367 = vld [vmem:[%s7] sm:$0xff]
        %v1368 = vld [vmem:[%s7 + $0x8] sm:$0xff]
        %v1369 = vld [vmem:[%s7 + $0x10] sm:$0xff]
        %v1370 = vld [vmem:[%s7 + $0x18] sm:$0xff]
        %v1371 = vld [vmem:[%s7 + $0x20] sm:$0xff]
        %v1372 = vld [vmem:[%s7 + $0x28] sm:$0xff]
        %v1373 = vld [vmem:[%s7 + $0x30] sm:$0xff]
        %v1374 = vld [vmem:[%s7 + $0x38] sm:$0xff]
        %v1375 = vld [vmem:[%s7 + $0x40] sm:$0xff]
        %v1376 = vld [vmem:[%s7 + $0x48] sm:$0xff]
        %v1377 = vld [vmem:[%s7 + $0x50] sm:$0xff]
        %v1378 = vld [vmem:[%s7 + $0x58] sm:$0xff]
        %v1379 = vld [vmem:[%s7 + $0x60] sm:$0xff]
        %v1380 = vld [vmem:[%s7 + $0x68] sm:$0xff]
        %v1381 = vld [vmem:[%s7 + $0x70] sm:$0xff]
        %v1382 = vld [vmem:[%s7 + $0x78] sm:$0xff]
        %v1383 = vld [vmem:[%s7 + $0x80] sm:$0xff]
        %v1384 = vld [vmem:[%s7 + $0x88] sm:$0xff]
        %v1385 = vld [vmem:[%s7 + $0x90] sm:$0xff]
        %v1386 = vld [vmem:[%s7 + $0x98] sm:$0xff]
        %v1387 = vld [vmem:[%s7 + $0xa0] sm:$0xff]
        %v1388 = vld [vmem:[%s7 + $0xa8] sm:$0xff]
        %v1389 = vld [vmem:[%s7 + $0xb0] sm:$0xff]
        %v1390 = vld [vmem:[%s7 + $0xb8] sm:$0xff]
        %v1391 = vld [vmem:[%s7 + $0xc0] sm:$0xff]
        %v1392 = vld [vmem:[%s7 + $0xc8] sm:$0xff]
        %v1393 = vld [vmem:[%s7 + $0xd0] sm:$0xff]
        %v1394 = vld [vmem:[%s7 + $0xd8] sm:$0xff]
        %v1395 = vld [vmem:[%s7 + $0xe0] sm:$0xff]
        %v1396 = vld [vmem:[%s7 + $0xe8] sm:$0xff]
        %v1397 = vld [vmem:[%s7 + $0xf0] sm:$0xff]
        %v1398 = vld [vmem:[%s7 + $0xf8] sm:$0xff]
        %v1399 = vld [vmem:[%s7 + $0x100] sm:$0xff]
        %v1400 = vld [vmem:[%s7 + $0x108] sm:$0xff]
        %v1401 = vld [vmem:[%s7 + $0x110] sm:$0xff]
        %v1402 = vld [vmem:[%s7 + $0x118] sm:$0xff]
        %v1403 = vld [vmem:[%s7 + $0x120] sm:$0xff]
        %v1404 = vld [vmem:[%s7 + $0x128] sm:$0xff]
        %v1405 = vld [vmem:[%s7 + $0x130] sm:$0xff]
        %v1406 = vld [vmem:[%s7 + $0x138] sm:$0xff]
        %v1407 = vld [vmem:[%s7 + $0x140] sm:$0xff]
        %v1408 = vld [vmem:[%s7 + $0x148] sm:$0xff]
        %v1409 = vld [vmem:[%s7 + $0x150] sm:$0xff]
        %v1410 = vld [vmem:[%s7 + $0x158] sm:$0xff]
        %v1411 = vld [vmem:[%s7 + $0x160] sm:$0xff]
        %v1412 = vld [vmem:[%s7 + $0x168] sm:$0xff]
        %v1413 = vld [vmem:[%s7 + $0x170] sm:$0xff]
        %v1414 = vld [vmem:[%s7 + $0x178] sm:$0xff]
        %v1415 = vld [vmem:[%s7 + $0x180] sm:$0xff]
        %v1416 = vld [vmem:[%s7 + $0x188] sm:$0xff]
        %v1417 = vld [vmem:[%s7 + $0x190] sm:$0xff]
        %v1418 = vld [vmem:[%s7 + $0x198] sm:$0xff]
        %v1419 = vld [vmem:[%s7 + $0x1a0] sm:$0xff]
        %v1420 = vld [vmem:[%s7 + $0x1a8] sm:$0xff]
        %v1421 = vld [vmem:[%s7 + $0x1b0] sm:$0xff]
        %v1422 = vld [vmem:[%s7 + $0x1b8] sm:$0xff]
        %v1423 = vld [vmem:[%s7 + $0x1c0] sm:$0xff]
        %v1424 = vld [vmem:[%s7 + $0x1c8] sm:$0xff]
        %v1425 = vld [vmem:[%s7 + $0x1d0] sm:$0xff]
        %v1426 = vld [vmem:[%s7 + $0x1d8] sm:$0xff]
        %v1427 = vld [vmem:[%s7 + $0x1e0] sm:$0xff]
        %v1428 = vld [vmem:[%s7 + $0x1e8] sm:$0xff]
        %v1429 = vld [vmem:[%s7 + $0x1f0] sm:$0xff]
        %v1430 = vld [vmem:[%s7 + $0x1f8] sm:$0xff]
        %v1431 = vld [vmem:[%s8] sm:$0x3]
        %v1433 = vperm.slane %v1431, 0
        %v1434 = vperm.slane %v1431, 1
        %1437 = vmatpush.msra.mxu0 %v1397
        %1438 = vmatpush.msra.mxu0 %v1395
        %1439 = vmatpush.msra.mxu0 %v1393
        %1440 = vmatpush.msra.mxu0 %v1391
        %1441 = vmatpush.msra.mxu0 %v1389
        %1442 = vmatpush.msra.mxu0 %v1387
        %1443 = vmatpush.msra.mxu0 %v1385
        %1444 = vmatpush.msra.mxu0 %v1383
        %1445 = vmatpush.msra.mxu0 %v1381
        %1446 = vmatpush.msra.mxu0 %v1379
        %1447 = vmatpush.msra.mxu0 %v1377
        %1448 = vmatpush.msra.mxu0 %v1375
        %1449 = vmatpush.msra.mxu0 %v1373
        %1450 = vmatpush.msra.mxu0 %v1371
        %1451 = vmatpush.msra.mxu0 %v1369
        %1452 = vmatpush.msra.mxu0 %v1367
        %1453 = vmatmul.f32.gmra.mxu0 %v1335
        %v1454 = vpop.f32.mrf.mxu0
        %v1455 = vadd.f32 %v1433, %v1454
        %1456 = vmatmul.f32.gmra.mxu0 %v1337
        %v1457 = vpop.f32.mrf.mxu0
        %v1458 = vadd.f32 %v1433, %v1457
        %1459 = vmatmul.f32.gmra.mxu0 %v1339
        %v1460 = vpop.f32.mrf.mxu0
        %v1461 = vadd.f32 %v1433, %v1460
        %1462 = vmatmul.f32.gmra.mxu0 %v1341
        %v1463 = vpop.f32.mrf.mxu0
        %v1464 = vadd.f32 %v1433, %v1463
        %1465 = vmatmul.f32.gmra.mxu0 %v1343
        %v1466 = vpop.f32.mrf.mxu0
        %v1467 = vadd.f32 %v1433, %v1466
        %1468 = vmatmul.f32.gmra.mxu0 %v1345
        %v1469 = vpop.f32.mrf.mxu0
        %v1470 = vadd.f32 %v1433, %v1469
        %1471 = vmatmul.f32.gmra.mxu0 %v1347
        %v1472 = vpop.f32.mrf.mxu0
        %v1473 = vadd.f32 %v1433, %v1472
        %1474 = vmatmul.f32.gmra.mxu0 %v1349
        %v1475 = vpop.f32.mrf.mxu0
        %v1476 = vadd.f32 %v1433, %v1475
        %1477 = vmatmul.f32.gmra.mxu0 %v1351
        %v1478 = vpop.f32.mrf.mxu0
        %v1479 = vadd.f32 %v1433, %v1478
        %1480 = vmatmul.f32.gmra.mxu0 %v1353
        %v1481 = vpop.f32.mrf.mxu0
        %v1482 = vadd.f32 %v1433, %v1481
        %1483 = vmatmul.f32.gmra.mxu0 %v1355
        %v1484 = vpop.f32.mrf.mxu0
        %v1485 = vadd.f32 %v1433, %v1484
        %1486 = vmatmul.f32.gmra.mxu0 %v1357
        %v1487 = vpop.f32.mrf.mxu0
        %v1488 = vadd.f32 %v1433, %v1487
        %1489 = vmatmul.f32.gmra.mxu0 %v1359
        %v1490 = vpop.f32.mrf.mxu0
        %v1491 = vadd.f32 %v1433, %v1490
        %1492 = vmatmul.f32.gmra.mxu0 %v1361
        %v1493 = vpop.f32.mrf.mxu0
        %v1494 = vadd.f32 %v1433, %v1493
        %1495 = vmatmul.f32.gmra.mxu0 %v1363
        %v1496 = vpop.f32.mrf.mxu0
        %v1497 = vadd.f32 %v1433, %v1496
        %1498 = vmatmul.f32.gmra.mxu0 %v1365
        %v1499 = vpop.f32.mrf.mxu0
        %v1500 = vadd.f32 %v1433, %v1499
        %1501 = vdwg.mxu0
        %1502 = vmatpush.msra.mxu0 %v1429
        %1503 = vmatpush.msra.mxu0 %v1427
        %1504 = vmatpush.msra.mxu0 %v1425
        %1505 = vmatpush.msra.mxu0 %v1423
        %1506 = vmatpush.msra.mxu0 %v1421
        %1507 = vmatpush.msra.mxu0 %v1419
        %1508 = vmatpush.msra.mxu0 %v1417
        %1509 = vmatpush.msra.mxu0 %v1415
        %1510 = vmatpush.msra.mxu0 %v1413
        %1511 = vmatpush.msra.mxu0 %v1411
        %1512 = vmatpush.msra.mxu0 %v1409
        %1513 = vmatpush.msra.mxu0 %v1407
        %1514 = vmatpush.msra.mxu0 %v1405
        %1515 = vmatpush.msra.mxu0 %v1403
        %1516 = vmatpush.msra.mxu0 %v1401
        %1517 = vmatpush.msra.mxu0 %v1399
        %1518 = vmatmul.f32.gmra.mxu0 %v1336
        %v1519 = vpop.f32.mrf.mxu0
        %v1520 = vadd.f32 %v1455, %v1519
        %1521 = vmatmul.f32.gmra.mxu0 %v1338
        %v1522 = vpop.f32.mrf.mxu0
        %v1523 = vadd.f32 %v1458, %v1522
        %1524 = vmatmul.f32.gmra.mxu0 %v1340
        %v1525 = vpop.f32.mrf.mxu0
        %v1526 = vadd.f32 %v1461, %v1525
        %1527 = vmatmul.f32.gmra.mxu0 %v1342
        %v1528 = vpop.f32.mrf.mxu0
        %v1529 = vadd.f32 %v1464, %v1528
        %1530 = vmatmul.f32.gmra.mxu0 %v1344
        %v1531 = vpop.f32.mrf.mxu0
        %v1532 = vadd.f32 %v1467, %v1531
        %1533 = vmatmul.f32.gmra.mxu0 %v1346
        %v1534 = vpop.f32.mrf.mxu0
        %v1535 = vadd.f32 %v1470, %v1534
        %1536 = vmatmul.f32.gmra.mxu0 %v1348
        %v1537 = vpop.f32.mrf.mxu0
        %v1538 = vadd.f32 %v1473, %v1537
        %1539 = vmatmul.f32.gmra.mxu0 %v1350
        %v1540 = vpop.f32.mrf.mxu0
        %v1541 = vadd.f32 %v1476, %v1540
        %1542 = vmatmul.f32.gmra.mxu0 %v1352
        %v1543 = vpop.f32.mrf.mxu0
        %v1544 = vadd.f32 %v1479, %v1543
        %1545 = vmatmul.f32.gmra.mxu0 %v1354
        %v1546 = vpop.f32.mrf.mxu0
        %v1547 = vadd.f32 %v1482, %v1546
        %1548 = vmatmul.f32.gmra.mxu0 %v1356
        %v1549 = vpop.f32.mrf.mxu0
        %v1550 = vadd.f32 %v1485, %v1549
        %1551 = vmatmul.f32.gmra.mxu0 %v1358
        %v1552 = vpop.f32.mrf.mxu0
        %v1553 = vadd.f32 %v1488, %v1552
        %1554 = vmatmul.f32.gmra.mxu0 %v1360
        %v1555 = vpop.f32.mrf.mxu0
        %v1556 = vadd.f32 %v1491, %v1555
        %1557 = vmatmul.f32.gmra.mxu0 %v1362
        %v1558 = vpop.f32.mrf.mxu0
        %v1559 = vadd.f32 %v1494, %v1558
        %1560 = vmatmul.f32.gmra.mxu0 %v1364
        %v1561 = vpop.f32.mrf.mxu0
        %v1562 = vadd.f32 %v1497, %v1561
        %1563 = vmatmul.f32.gmra.mxu0 %v1366
        %v1564 = vpop.f32.mrf.mxu0
        %v1565 = vadd.f32 %v1500, %v1564
        %1566 = vdwg.mxu0
        %1567 = vmatpush.msra.mxu0 %v1398
        %1568 = vmatpush.msra.mxu0 %v1396
        %1569 = vmatpush.msra.mxu0 %v1394
        %1570 = vmatpush.msra.mxu0 %v1392
        %1571 = vmatpush.msra.mxu0 %v1390
        %1572 = vmatpush.msra.mxu0 %v1388
        %1573 = vmatpush.msra.mxu0 %v1386
        %1574 = vmatpush.msra.mxu0 %v1384
        %1575 = vmatpush.msra.mxu0 %v1382
        %1576 = vmatpush.msra.mxu0 %v1380
        %1577 = vmatpush.msra.mxu0 %v1378
        %1578 = vmatpush.msra.mxu0 %v1376
        %1579 = vmatpush.msra.mxu0 %v1374
        %1580 = vmatpush.msra.mxu0 %v1372
        %1581 = vmatpush.msra.mxu0 %v1370
        %1582 = vmatpush.msra.mxu0 %v1368
        %1583 = vmatmul.f32.gmra.mxu0 %v1335
        %v1584 = vpop.f32.mrf.mxu0
        %v1585 = vadd.f32 %v1434, %v1584
        %1586 = vmatmul.f32.gmra.mxu0 %v1337
        %v1587 = vpop.f32.mrf.mxu0
        %v1588 = vadd.f32 %v1434, %v1587
        %1589 = vmatmul.f32.gmra.mxu0 %v1339
        %v1590 = vpop.f32.mrf.mxu0
        %v1591 = vadd.f32 %v1434, %v1590
        %1592 = vmatmul.f32.gmra.mxu0 %v1341
        %v1593 = vpop.f32.mrf.mxu0
        %v1594 = vadd.f32 %v1434, %v1593
        %1595 = vmatmul.f32.gmra.mxu0 %v1343
        %v1596 = vpop.f32.mrf.mxu0
        %v1597 = vadd.f32 %v1434, %v1596
        %1598 = vmatmul.f32.gmra.mxu0 %v1345
        %v1599 = vpop.f32.mrf.mxu0
        %v1600 = vadd.f32 %v1434, %v1599
        %1601 = vmatmul.f32.gmra.mxu0 %v1347
        %v1602 = vpop.f32.mrf.mxu0
        %v1603 = vadd.f32 %v1434, %v1602
        %1604 = vmatmul.f32.gmra.mxu0 %v1349
        %v1605 = vpop.f32.mrf.mxu0
        %v1606 = vadd.f32 %v1434, %v1605
        %1607 = vmatmul.f32.gmra.mxu0 %v1351
        %v1608 = vpop.f32.mrf.mxu0
        %v1609 = vadd.f32 %v1434, %v1608
        %1610 = vmatmul.f32.gmra.mxu0 %v1353
        %v1611 = vpop.f32.mrf.mxu0
        %v1612 = vadd.f32 %v1434, %v1611
        %1613 = vmatmul.f32.gmra.mxu0 %v1355
        %v1614 = vpop.f32.mrf.mxu0
        %v1615 = vadd.f32 %v1434, %v1614
        %1616 = vmatmul.f32.gmra.mxu0 %v1357
        %v1617 = vpop.f32.mrf.mxu0
        %v1618 = vadd.f32 %v1434, %v1617
        %1619 = vmatmul.f32.gmra.mxu0 %v1359
        %v1620 = vpop.f32.mrf.mxu0
        %v1621 = vadd.f32 %v1434, %v1620
        %1622 = vmatmul.f32.gmra.mxu0 %v1361
        %v1623 = vpop.f32.mrf.mxu0
        %v1624 = vadd.f32 %v1434, %v1623
        %1625 = vmatmul.f32.gmra.mxu0 %v1363
        %v1626 = vpop.f32.mrf.mxu0
        %v1627 = vadd.f32 %v1434, %v1626
        %1628 = vmatmul.f32.gmra.mxu0 %v1365
        %v1629 = vpop.f32.mrf.mxu0
        %v1630 = vadd.f32 %v1434, %v1629
        %1631 = vdwg.mxu0
        %1632 = vmatpush.msra.mxu0 %v1430
        %1633 = vmatpush.msra.mxu0 %v1428
        %1634 = vmatpush.msra.mxu0 %v1426
        %1635 = vmatpush.msra.mxu0 %v1424
        %1636 = vmatpush.msra.mxu0 %v1422
        %1637 = vmatpush.msra.mxu0 %v1420
        %1638 = vmatpush.msra.mxu0 %v1418
        %1639 = vmatpush.msra.mxu0 %v1416
        %1640 = vmatpush.msra.mxu0 %v1414
        %1641 = vmatpush.msra.mxu0 %v1412
        %1642 = vmatpush.msra.mxu0 %v1410
        %1643 = vmatpush.msra.mxu0 %v1408
        %1644 = vmatpush.msra.mxu0 %v1406
        %1645 = vmatpush.msra.mxu0 %v1404
        %1646 = vmatpush.msra.mxu0 %v1402
        %1647 = vmatpush.msra.mxu0 %v1400
        %1648 = vmatmul.f32.gmra.mxu0 %v1336
        %v1649 = vpop.f32.mrf.mxu0
        %v1650 = vadd.f32 %v1585, %v1649
        %1651 = vmatmul.f32.gmra.mxu0 %v1338
        %v1652 = vpop.f32.mrf.mxu0
        %v1653 = vadd.f32 %v1588, %v1652
        %1654 = vmatmul.f32.gmra.mxu0 %v1340
        %v1655 = vpop.f32.mrf.mxu0
        %v1656 = vadd.f32 %v1591, %v1655
        %1657 = vmatmul.f32.gmra.mxu0 %v1342
        %v1658 = vpop.f32.mrf.mxu0
        %v1659 = vadd.f32 %v1594, %v1658
        %1660 = vmatmul.f32.gmra.mxu0 %v1344
        %v1661 = vpop.f32.mrf.mxu0
        %v1662 = vadd.f32 %v1597, %v1661
        %1663 = vmatmul.f32.gmra.mxu0 %v1346
        %v1664 = vpop.f32.mrf.mxu0
        %v1665 = vadd.f32 %v1600, %v1664
        %1666 = vmatmul.f32.gmra.mxu0 %v1348
        %v1667 = vpop.f32.mrf.mxu0
        %v1668 = vadd.f32 %v1603, %v1667
        %1669 = vmatmul.f32.gmra.mxu0 %v1350
        %v1670 = vpop.f32.mrf.mxu0
        %v1671 = vadd.f32 %v1606, %v1670
        %1672 = vmatmul.f32.gmra.mxu0 %v1352
        %v1673 = vpop.f32.mrf.mxu0
        %v1674 = vadd.f32 %v1609, %v1673
        %1675 = vmatmul.f32.gmra.mxu0 %v1354
        %v1676 = vpop.f32.mrf.mxu0
        %v1677 = vadd.f32 %v1612, %v1676
        %1678 = vmatmul.f32.gmra.mxu0 %v1356
        %v1679 = vpop.f32.mrf.mxu0
        %v1680 = vadd.f32 %v1615, %v1679
        %1681 = vmatmul.f32.gmra.mxu0 %v1358
        %v1682 = vpop.f32.mrf.mxu0
        %v1683 = vadd.f32 %v1618, %v1682
        %1684 = vmatmul.f32.gmra.mxu0 %v1360
        %v1685 = vpop.f32.mrf.mxu0
        %v1686 = vadd.f32 %v1621, %v1685
        %1687 = vmatmul.f32.gmra.mxu0 %v1362
        %v1688 = vpop.f32.mrf.mxu0
        %v1689 = vadd.f32 %v1624, %v1688
        %1690 = vmatmul.f32.gmra.mxu0 %v1364
        %v1691 = vpop.f32.mrf.mxu0
        %v1692 = vadd.f32 %v1627, %v1691
        %1693 = vmatmul.f32.gmra.mxu0 %v1366
        %v1694 = vpop.f32.mrf.mxu0
        %v1695 = vadd.f32 %v1630, %v1694
        %1696 = vdwg.mxu0
        %v1697 = vmax.f32 %v1520, 0.0
        %v1698 = vmax.f32 %v1523, 0.0
        %v1699 = vmax.f32 %v1526, 0.0
        %v1700 = vmax.f32 %v1529, 0.0
        %v1701 = vmax.f32 %v1532, 0.0
        %v1702 = vmax.f32 %v1535, 0.0
        %v1703 = vmax.f32 %v1538, 0.0
        %v1704 = vmax.f32 %v1541, 0.0
        %v1705 = vmax.f32 %v1544, 0.0
        %v1706 = vmax.f32 %v1547, 0.0
        %v1707 = vmax.f32 %v1550, 0.0
        %v1708 = vmax.f32 %v1553, 0.0
        %v1709 = vmax.f32 %v1556, 0.0
        %v1710 = vmax.f32 %v1559, 0.0
        %v1711 = vmax.f32 %v1562, 0.0
        %v1712 = vmax.f32 %v1565, 0.0
        %v1713 = vld [vmem:[%s9] sm:$0xff]
        %v1714 = vld [vmem:[%s9 + $0x8] sm:$0xff]
        %v1715 = vld [vmem:[%s9 + $0x10] sm:$0xff]
        %v1716 = vld [vmem:[%s9 + $0x18] sm:$0xff]
        %v1717 = vld [vmem:[%s9 + $0x20] sm:$0xff]
        %v1718 = vld [vmem:[%s9 + $0x28] sm:$0xff]
        %v1719 = vld [vmem:[%s9 + $0x30] sm:$0xff]
        %v1720 = vld [vmem:[%s9 + $0x38] sm:$0xff]
        %v1721 = vld [vmem:[%s9 + $0x40] sm:$0xff]
        %v1722 = vld [vmem:[%s9 + $0x48] sm:$0xff]
        %v1723 = vld [vmem:[%s9 + $0x50] sm:$0xff]
        %v1724 = vld [vmem:[%s9 + $0x58] sm:$0xff]
        %v1725 = vld [vmem:[%s9 + $0x60] sm:$0xff]
        %v1726 = vld [vmem:[%s9 + $0x68] sm:$0xff]
        %v1727 = vld [vmem:[%s9 + $0x70] sm:$0xff]
        %v1728 = vld [vmem:[%s9 + $0x78] sm:$0xff]
        %v1729 = vld [vmem:[%s10] sm:$0x1]
        %v1731 = vperm.slane %v1729, 0
        %1733 = vmatpush.msra.mxu0 %v1728
        %1734 = vmatpush.msra.mxu0 %v1727
        %1735 = vmatpush.msra.mxu0 %v1726
        %1736 = vmatpush.msra.mxu0 %v1725
        %1737 = vmatpush.msra.mxu0 %v1724
        %1738 = vmatpush.msra.mxu0 %v1723
        %1739 = vmatpush.msra.mxu0 %v1722
        %1740 = vmatpush.msra.mxu0 %v1721
        %1741 = vmatpush.msra.mxu0 %v1720
        %1742 = vmatpush.msra.mxu0 %v1719
        %1743 = vmatpush.msra.mxu0 %v1718
        %1744 = vmatpush.msra.mxu0 %v1717
        %1745 = vmatpush.msra.mxu0 %v1716
        %1746 = vmatpush.msra.mxu0 %v1715
        %1747 = vmatpush.msra.mxu0 %v1714
        %1748 = vmatpush.msra.mxu0 %v1713
        %1749 = vmatmul.f32.gmra.mxu0 %v1697
        %v1750 = vpop.f32.mrf.mxu0
        %v1751 = vadd.f32 %v1731, %v1750
        %1752 = vmatmul.f32.gmra.mxu0 %v1698
        %v1753 = vpop.f32.mrf.mxu0
        %v1754 = vadd.f32 %v1731, %v1753
        %1755 = vmatmul.f32.gmra.mxu0 %v1699
        %v1756 = vpop.f32.mrf.mxu0
        %v1757 = vadd.f32 %v1731, %v1756
        %1758 = vmatmul.f32.gmra.mxu0 %v1700
        %v1759 = vpop.f32.mrf.mxu0
        %v1760 = vadd.f32 %v1731, %v1759
        %1761 = vmatmul.f32.gmra.mxu0 %v1701
        %v1762 = vpop.f32.mrf.mxu0
        %v1763 = vadd.f32 %v1731, %v1762
        %1764 = vmatmul.f32.gmra.mxu0 %v1702
        %v1765 = vpop.f32.mrf.mxu0
        %v1766 = vadd.f32 %v1731, %v1765
        %1767 = vmatmul.f32.gmra.mxu0 %v1703
        %v1768 = vpop.f32.mrf.mxu0
        %v1769 = vadd.f32 %v1731, %v1768
        %1770 = vmatmul.f32.gmra.mxu0 %v1704
        %v1771 = vpop.f32.mrf.mxu0
        %v1772 = vadd.f32 %v1731, %v1771
        %1773 = vmatmul.f32.gmra.mxu0 %v1705
        %v1774 = vpop.f32.mrf.mxu0
        %v1775 = vadd.f32 %v1731, %v1774
        %1776 = vmatmul.f32.gmra.mxu0 %v1706
        %v1777 = vpop.f32.mrf.mxu0
        %v1778 = vadd.f32 %v1731, %v1777
        %1779 = vmatmul.f32.gmra.mxu0 %v1707
        %v1780 = vpop.f32.mrf.mxu0
        %v1781 = vadd.f32 %v1731, %v1780
        %1782 = vmatmul.f32.gmra.mxu0 %v1708
        %v1783 = vpop.f32.mrf.mxu0
        %v1784 = vadd.f32 %v1731, %v1783
        %1785 = vmatmul.f32.gmra.mxu0 %v1709
        %v1786 = vpop.f32.mrf.mxu0
        %v1787 = vadd.f32 %v1731, %v1786
        %1788 = vmatmul.f32.gmra.mxu0 %v1710
        %v1789 = vpop.f32.mrf.mxu0
        %v1790 = vadd.f32 %v1731, %v1789
        %1791 = vmatmul.f32.gmra.mxu0 %v1711
        %v1792 = vpop.f32.mrf.mxu0
        %v1793 = vadd.f32 %v1731, %v1792
        %1794 = vmatmul.f32.gmra.mxu0 %v1712
        %v1795 = vpop.f32.mrf.mxu0
        %v1796 = vadd.f32 %v1731, %v1795
        %1797 = vdwg.mxu0
        %v1798 = vsub.f32 %v1751, %v713
        %v1799 = vsub.f32 %v1754, %v714
        %v1800 = vsub.f32 %v1757, %v715
        %v1801 = vsub.f32 %v1760, %v716
        %v1802 = vsub.f32 %v1763, %v717
        %v1803 = vsub.f32 %v1766, %v718
        %v1804 = vsub.f32 %v1769, %v719
        %v1805 = vsub.f32 %v1772, %v720
        %v1806 = vsub.f32 %v1775, %v721
        %v1807 = vsub.f32 %v1778, %v722
        %v1808 = vsub.f32 %v1781, %v723
        %v1809 = vsub.f32 %v1784, %v724
        %v1810 = vsub.f32 %v1787, %v725
        %v1811 = vsub.f32 %v1790, %v726
        %v1812 = vsub.f32 %v1793, %v727
        %v1813 = vsub.f32 %v1796, %v728
        %v1814 = vmul.f32 %v1798, %v1798
        %v1815 = vmul.f32 %v1799, %v1799
        %v1816 = vmul.f32 %v1800, %v1800
        %v1817 = vmul.f32 %v1801, %v1801
        %v1818 = vmul.f32 %v1802, %v1802
        %v1819 = vmul.f32 %v1803, %v1803
        %v1820 = vmul.f32 %v1804, %v1804
        %v1821 = vmul.f32 %v1805, %v1805
        %v1822 = vmul.f32 %v1806, %v1806
        %v1823 = vmul.f32 %v1807, %v1807
        %v1824 = vmul.f32 %v1808, %v1808
        %v1825 = vmul.f32 %v1809, %v1809
        %v1826 = vmul.f32 %v1810, %v1810
        %v1827 = vmul.f32 %v1811, %v1811
        %v1828 = vmul.f32 %v1812, %v1812
        %v1829 = vmul.f32 %v1813, %v1813
        %1830 = vadd.xlane.f32.xlu0 %v1814
        %v1831 = vpop.xlane.xlu0 %1830
        %1832 = vadd.xlane.f32.xlu0 %v1815
        %v1833 = vpop.xlane.xlu0 %1832
        %1834 = vadd.xlane.f32.xlu0 %v1816
        %v1835 = vpop.xlane.xlu0 %1834
        %1836 = vadd.xlane.f32.xlu0 %v1817
        %v1837 = vpop.xlane.xlu0 %1836
        %1838 = vadd.xlane.f32.xlu0 %v1818
        %v1839 = vpop.xlane.xlu0 %1838
        %1840 = vadd.xlane.f32.xlu0 %v1819
        %v1841 = vpop.xlane.xlu0 %1840
        %1842 = vadd.xlane.f32.xlu0 %v1820
        %v1843 = vpop.xlane.xlu0 %1842
        %1844 = vadd.xlane.f32.xlu0 %v1821
        %v1845 = vpop.xlane.xlu0 %1844
        %1846 = vadd.xlane.f32.xlu0 %v1822
        %v1847 = vpop.xlane.xlu0 %1846
        %1848 = vadd.xlane.f32.xlu0 %v1823
        %v1849 = vpop.xlane.xlu0 %1848
        %1850 = vadd.xlane.f32.xlu0 %v1824
        %v1851 = vpop.xlane.xlu0 %1850
        %1852 = vadd.xlane.f32.xlu0 %v1825
        %v1853 = vpop.xlane.xlu0 %1852
        %1854 = vadd.xlane.f32.xlu0 %v1826
        %v1855 = vpop.xlane.xlu0 %1854
        %1856 = vadd.xlane.f32.xlu0 %v1827
        %v1857 = vpop.xlane.xlu0 %1856
        %1858 = vadd.xlane.f32.xlu0 %v1828
        %v1859 = vpop.xlane.xlu0 %1858
        %1860 = vadd.xlane.f32.xlu0 %v1829
        %v1861 = vpop.xlane.xlu0 %1860
        %v1862 = vmul.f32 %v1831, 0.03125
        %v1863 = vmul.f32 %v1833, 0.03125
        %v1864 = vmul.f32 %v1835, 0.03125
        %v1865 = vmul.f32 %v1837, 0.03125
        %v1866 = vmul.f32 %v1839, 0.03125
        %v1867 = vmul.f32 %v1841, 0.03125
        %v1868 = vmul.f32 %v1843, 0.03125
        %v1869 = vmul.f32 %v1845, 0.03125
        %v1870 = vmul.f32 %v1847, 0.03125
        %v1871 = vmul.f32 %v1849, 0.03125
        %v1872 = vmul.f32 %v1851, 0.03125
        %v1873 = vmul.f32 %v1853, 0.03125
        %v1874 = vmul.f32 %v1855, 0.03125
        %v1875 = vmul.f32 %v1857, 0.03125
        %v1876 = vmul.f32 %v1859, 0.03125
        %v1877 = vmul.f32 %v1861, 0.03125
        %1878 = vmax.xlane.f32.xlu0 %v1650
        %v1879 = vpop.xlane.xlu0 %1878
        %1880 = vmax.xlane.f32.xlu0 %v1653
        %v1881 = vpop.xlane.xlu0 %1880
        %1882 = vmax.xlane.f32.xlu0 %v1656
        %v1883 = vpop.xlane.xlu0 %1882
        %1884 = vmax.xlane.f32.xlu0 %v1659
        %v1885 = vpop.xlane.xlu0 %1884
        %1886 = vmax.xlane.f32.xlu0 %v1662
        %v1887 = vpop.xlane.xlu0 %1886
        %1888 = vmax.xlane.f32.xlu0 %v1665
        %v1889 = vpop.xlane.xlu0 %1888
        %1890 = vmax.xlane.f32.xlu0 %v1668
        %v1891 = vpop.xlane.xlu0 %1890
        %1892 = vmax.xlane.f32.xlu0 %v1671
        %v1893 = vpop.xlane.xlu0 %1892
        %1894 = vmax.xlane.f32.xlu0 %v1674
        %v1895 = vpop.xlane.xlu0 %1894
        %1896 = vmax.xlane.f32.xlu0 %v1677
        %v1897 = vpop.xlane.xlu0 %1896
        %1898 = vmax.xlane.f32.xlu0 %v1680
        %v1899 = vpop.xlane.xlu0 %1898
        %1900 = vmax.xlane.f32.xlu0 %v1683
        %v1901 = vpop.xlane.xlu0 %1900
        %1902 = vmax.xlane.f32.xlu0 %v1686
        %v1903 = vpop.xlane.xlu0 %1902
        %1904 = vmax.xlane.f32.xlu0 %v1689
        %v1905 = vpop.xlane.xlu0 %1904
        %1906 = vmax.xlane.f32.xlu0 %v1692
        %v1907 = vpop.xlane.xlu0 %1906
        %1908 = vmax.xlane.f32.xlu0 %v1695
        %v1909 = vpop.xlane.xlu0 %1908
        %v1910 = vsub.f32 %v1650, %v1879
        %v1911 = vsub.f32 %v1653, %v1881
        %v1912 = vsub.f32 %v1656, %v1883
        %v1913 = vsub.f32 %v1659, %v1885
        %v1914 = vsub.f32 %v1662, %v1887
        %v1915 = vsub.f32 %v1665, %v1889
        %v1916 = vsub.f32 %v1668, %v1891
        %v1917 = vsub.f32 %v1671, %v1893
        %v1918 = vsub.f32 %v1674, %v1895
        %v1919 = vsub.f32 %v1677, %v1897
        %v1920 = vsub.f32 %v1680, %v1899
        %v1921 = vsub.f32 %v1683, %v1901
        %v1922 = vsub.f32 %v1686, %v1903
        %v1923 = vsub.f32 %v1689, %v1905
        %v1924 = vsub.f32 %v1692, %v1907
        %v1925 = vsub.f32 %v1695, %v1909
        %v1926 = vmul.f32 %v1910, 1.442695
        %v1927 = vpow.pop %v1926
        %v1928 = vmul.f32 %v1911, 1.442695
        %v1929 = vpow.pop %v1928
        %v1930 = vmul.f32 %v1912, 1.442695
        %v1931 = vpow.pop %v1930
        %v1932 = vmul.f32 %v1913, 1.442695
        %v1933 = vpow.pop %v1932
        %v1934 = vmul.f32 %v1914, 1.442695
        %v1935 = vpow.pop %v1934
        %v1936 = vmul.f32 %v1915, 1.442695
        %v1937 = vpow.pop %v1936
        %v1938 = vmul.f32 %v1916, 1.442695
        %v1939 = vpow.pop %v1938
        %v1940 = vmul.f32 %v1917, 1.442695
        %v1941 = vpow.pop %v1940
        %v1942 = vmul.f32 %v1918, 1.442695
        %v1943 = vpow.pop %v1942
        %v1944 = vmul.f32 %v1919, 1.442695
        %v1945 = vpow.pop %v1944
        %v1946 = vmul.f32 %v1920, 1.442695
        %v1947 = vpow.pop %v1946
        %v1948 = vmul.f32 %v1921, 1.442695
        %v1949 = vpow.pop %v1948
        %v1950 = vmul.f32 %v1922, 1.442695
        %v1951 = vpow.pop %v1950
        %v1952 = vmul.f32 %v1923, 1.442695
        %v1953 = vpow.pop %v1952
        %v1954 = vmul.f32 %v1924, 1.442695
        %v1955 = vpow.pop %v1954
        %v1956 = vmul.f32 %v1925, 1.442695
        %v1957 = vpow.pop %v1956
        %1958 = vadd.xlane.f32.xlu0 %v1927
        %v1959 = vpop.xlane.xlu0 %1958
        %1960 = vadd.xlane.f32.xlu0 %v1929
        %v1961 = vpop.xlane.xlu0 %1960
        %1962 = vadd.xlane.f32.xlu0 %v1931
        %v1963 = vpop.xlane.xlu0 %1962
        %1964 = vadd.xlane.f32.xlu0 %v1933
        %v1965 = vpop.xlane.xlu0 %1964
        %1966 = vadd.xlane.f32.xlu0 %v1935
        %v1967 = vpop.xlane.xlu0 %1966
        %1968 = vadd.xlane.f32.xlu0 %v1937
        %v1969 = vpop.xlane.xlu0 %1968
        %1970 = vadd.xlane.f32.xlu0 %v1939
        %v1971 = vpop.xlane.xlu0 %1970
        %1972 = vadd.xlane.f32.xlu0 %v1941
        %v1973 = vpop.xlane.xlu0 %1972
        %1974 = vadd.xlane.f32.xlu0 %v1943
        %v1975 = vpop.xlane.xlu0 %1974
        %1976 = vadd.xlane.f32.xlu0 %v1945
        %v1977 = vpop.xlane.xlu0 %1976
        %1978 = vadd.xlane.f32.xlu0 %v1947
        %v1979 = vpop.xlane.xlu0 %1978
        %1980 = vadd.xlane.f32.xlu0 %v1949
        %v1981 = vpop.xlane.xlu0 %1980
        %1982 = vadd.xlane.f32.xlu0 %v1951
        %v1983 = vpop.xlane.xlu0 %1982
        %1984 = vadd.xlane.f32.xlu0 %v1953
        %v1985 = vpop.xlane.xlu0 %1984
        %1986 = vadd.xlane.f32.xlu0 %v1955
        %v1987 = vpop.xlane.xlu0 %1986
        %1988 = vadd.xlane.f32.xlu0 %v1957
        %v1989 = vpop.xlane.xlu0 %1988
        %v1990 = vlog2.pop %v1959
        %v1991 = vmul.f32 %v1990, 0.6931472
        %v1992 = vlog2.pop %v1961
        %v1993 = vmul.f32 %v1992, 0.6931472
        %v1994 = vlog2.pop %v1963
        %v1995 = vmul.f32 %v1994, 0.6931472
        %v1996 = vlog2.pop %v1965
        %v1997 = vmul.f32 %v1996, 0.6931472
        %v1998 = vlog2.pop %v1967
        %v1999 = vmul.f32 %v1998, 0.6931472
        %v2000 = vlog2.pop %v1969
        %v2001 = vmul.f32 %v2000, 0.6931472
        %v2002 = vlog2.pop %v1971
        %v2003 = vmul.f32 %v2002, 0.6931472
        %v2004 = vlog2.pop %v1973
        %v2005 = vmul.f32 %v2004, 0.6931472
        %v2006 = vlog2.pop %v1975
        %v2007 = vmul.f32 %v2006, 0.6931472
        %v2008 = vlog2.pop %v1977
        %v2009 = vmul.f32 %v2008, 0.6931472
        %v2010 = vlog2.pop %v1979
        %v2011 = vmul.f32 %v2010, 0.6931472
        %v2012 = vlog2.pop %v1981
        %v2013 = vmul.f32 %v2012, 0.6931472
        %v2014 = vlog2.pop %v1983
        %v2015 = vmul.f32 %v2014, 0.6931472
        %v2016 = vlog2.pop %v1985
        %v2017 = vmul.f32 %v2016, 0.6931472
        %v2018 = vlog2.pop %v1987
        %v2019 = vmul.f32 %v2018, 0.6931472
        %v2020 = vlog2.pop %v1989
        %v2021 = vmul.f32 %v2020, 0.6931472
        %v2022 = vsub.f32 %v1910, %v1991
        %v2023 = vsub.f32 %v1911, %v1993
        %v2024 = vsub.f32 %v1912, %v1995
        %v2025 = vsub.f32 %v1913, %v1997
        %v2026 = vsub.f32 %v1914, %v1999
        %v2027 = vsub.f32 %v1915, %v2001
        %v2028 = vsub.f32 %v1916, %v2003
        %v2029 = vsub.f32 %v1917, %v2005
        %v2030 = vsub.f32 %v1918, %v2007
        %v2031 = vsub.f32 %v1919, %v2009
        %v2032 = vsub.f32 %v1920, %v2011
        %v2033 = vsub.f32 %v1921, %v2013
        %v2034 = vsub.f32 %v1922, %v2015
        %v2035 = vsub.f32 %v1923, %v2017
        %v2036 = vsub.f32 %v1924, %v2019
        %v2037 = vsub.f32 %v1925, %v2021
        %v2038 = vmul.f32 %v827, %v2022
        %v2039 = vmul.f32 %v828, %v2023
        %v2040 = vmul.f32 %v829, %v2024
        %v2041 = vmul.f32 %v830, %v2025
        %v2042 = vmul.f32 %v831, %v2026
        %v2043 = vmul.f32 %v832, %v2027
        %v2044 = vmul.f32 %v833, %v2028
        %v2045 = vmul.f32 %v834, %v2029
        %v2046 = vmul.f32 %v835, %v2030
        %v2047 = vmul.f32 %v836, %v2031
        %v2048 = vmul.f32 %v837, %v2032
        %v2049 = vmul.f32 %v838, %v2033
        %v2050 = vmul.f32 %v839, %v2034
        %v2051 = vmul.f32 %v840, %v2035
        %v2052 = vmul.f32 %v841, %v2036
        %v2053 = vmul.f32 %v842, %v2037
        %2054 = vadd.xlane.f32.xlu0 %v2038
        %v2055 = vpop.xlane.xlu0 %2054
        %2056 = vadd.xlane.f32.xlu0 %v2039
        %v2057 = vpop.xlane.xlu0 %2056
        %2058 = vadd.xlane.f32.xlu0 %v2040
        %v2059 = vpop.xlane.xlu0 %2058
        %2060 = vadd.xlane.f32.xlu0 %v2041
        %v2061 = vpop.xlane.xlu0 %2060
        %2062 = vadd.xlane.f32.xlu0 %v2042
        %v2063 = vpop.xlane.xlu0 %2062
        %2064 = vadd.xlane.f32.xlu0 %v2043
        %v2065 = vpop.xlane.xlu0 %2064
        %2066 = vadd.xlane.f32.xlu0 %v2044
        %v2067 = vpop.xlane.xlu0 %2066
        %2068 = vadd.xlane.f32.xlu0 %v2045
        %v2069 = vpop.xlane.xlu0 %2068
        %2070 = vadd.xlane.f32.xlu0 %v2046
        %v2071 = vpop.xlane.xlu0 %2070
        %2072 = vadd.xlane.f32.xlu0 %v2047
        %v2073 = vpop.xlane.xlu0 %2072
        %2074 = vadd.xlane.f32.xlu0 %v2048
        %v2075 = vpop.xlane.xlu0 %2074
        %2076 = vadd.xlane.f32.xlu0 %v2049
        %v2077 = vpop.xlane.xlu0 %2076
        %2078 = vadd.xlane.f32.xlu0 %v2050
        %v2079 = vpop.xlane.xlu0 %2078
        %2080 = vadd.xlane.f32.xlu0 %v2051
        %v2081 = vpop.xlane.xlu0 %2080
        %2082 = vadd.xlane.f32.xlu0 %v2052
        %v2083 = vpop.xlane.xlu0 %2082
        %2084 = vadd.xlane.f32.xlu0 %v2053
        %v2085 = vpop.xlane.xlu0 %2084
        %v2086 = vsub.f32 0.0, %v2055
        %v2087 = vsub.f32 0.0, %v2057
        %v2088 = vsub.f32 0.0, %v2059
        %v2089 = vsub.f32 0.0, %v2061
        %v2090 = vsub.f32 0.0, %v2063
        %v2091 = vsub.f32 0.0, %v2065
        %v2092 = vsub.f32 0.0, %v2067
        %v2093 = vsub.f32 0.0, %v2069
        %v2094 = vsub.f32 0.0, %v2071
        %v2095 = vsub.f32 0.0, %v2073
        %v2096 = vsub.f32 0.0, %v2075
        %v2097 = vsub.f32 0.0, %v2077
        %v2098 = vsub.f32 0.0, %v2079
        %v2099 = vsub.f32 0.0, %v2081
        %v2100 = vsub.f32 0.0, %v2083
        %v2101 = vsub.f32 0.0, %v2085
        %2102 = vst [vmem:[%s429] sm:$0xff] %v1862
        %2103 = vst [vmem:[%s429 + $0x8] sm:$0xff] %v2086
        %2104 = vst [vmem:[%s429 + $0x10] sm:$0xff] %v1863
        %2105 = vst [vmem:[%s429 + $0x18] sm:$0xff] %v2087
        %2106 = vst [vmem:[%s429 + $0x20] sm:$0xff] %v1864
        %2107 = vst [vmem:[%s429 + $0x28] sm:$0xff] %v2088
        %2108 = vst [vmem:[%s429 + $0x30] sm:$0xff] %v1865
        %2109 = vst [vmem:[%s429 + $0x38] sm:$0xff] %v2089
        %2110 = vst [vmem:[%s429 + $0x40] sm:$0xff] %v1866
        %2111 = vst [vmem:[%s429 + $0x48] sm:$0xff] %v2090
        %2112 = vst [vmem:[%s429 + $0x50] sm:$0xff] %v1867
        %2113 = vst [vmem:[%s429 + $0x58] sm:$0xff] %v2091
        %2114 = vst [vmem:[%s429 + $0x60] sm:$0xff] %v1868
        %2115 = vst [vmem:[%s429 + $0x68] sm:$0xff] %v2092
        %2116 = vst [vmem:[%s429 + $0x70] sm:$0xff] %v1869
        %2117 = vst [vmem:[%s429 + $0x78] sm:$0xff] %v2093
        %2118 = vst [vmem:[%s429 + $0x80] sm:$0xff] %v1870
        %2119 = vst [vmem:[%s429 + $0x88] sm:$0xff] %v2094
        %2120 = vst [vmem:[%s429 + $0x90] sm:$0xff] %v1871
        %2121 = vst [vmem:[%s429 + $0x98] sm:$0xff] %v2095
        %2122 = vst [vmem:[%s429 + $0xa0] sm:$0xff] %v1872
        %2123 = vst [vmem:[%s429 + $0xa8] sm:$0xff] %v2096
        %2124 = vst [vmem:[%s429 + $0xb0] sm:$0xff] %v1873
        %2125 = vst [vmem:[%s429 + $0xb8] sm:$0xff] %v2097
        %2126 = vst [vmem:[%s429 + $0xc0] sm:$0xff] %v1874
        %2127 = vst [vmem:[%s429 + $0xc8] sm:$0xff] %v2098
        %2128 = vst [vmem:[%s429 + $0xd0] sm:$0xff] %v1875
        %2129 = vst [vmem:[%s429 + $0xd8] sm:$0xff] %v2099
        %2130 = vst [vmem:[%s429 + $0xe0] sm:$0xff] %v1876
        %2131 = vst [vmem:[%s429 + $0xe8] sm:$0xff] %v2100
        %2132 = vst [vmem:[%s429 + $0xf0] sm:$0xff] %v1877
        %2133 = vst [vmem:[%s429 + $0xf8] sm:$0xff] %v2101
        %s2134 = sand.u32 %s280, 1
        %s2135 = scalar_lea.sflag [#allocation4], %s2134
        %s2136 = sand.u32 %s280, 1
        %s2137 = smul.addr %s2136, 256
        %s2138 = scalar_lea.vmem [#allocation5], %s2137
        // Predicated region
        $region69: #{tpu_custom_call.1} parent=63 // pred_check
          %p2139 = pneg %p290
        $region70: #{tpu_custom_call.1} parent=63 // pred_check_branch
          %2141 = sbr.rel (%p2139) target = $region72
        $region71: #{tpu_custom_call.1} parent=63 // pred_region
          %s2142 = smul.u32 16, %s26
          %2144 = vsyncadd %s2135, 0
          %s2145 = smul.addr %s2142, 2
          %s2146 = smul.addr %s2145, 8
          %s2147 = scalar_lea.hbm %s11, %s2146
          %s2148 = sshll.u32 %s2138, 4
          %s2149 = int_to_ptr.vmem [resolvable:$true] %s2148
          %s2150 = sshll.u32 %s2147, 4
          %s2151 = int_to_ptr.hbm [resolvable:$true] %s2150
          %2156 = dma.vmem_to_hbm [thread:$0]  %s2149, 4096, %s2151, %s2135, 256, 256, 16
        $region72: #{tpu_custom_call.1} parent=63 // pred_fallthru
          _
      $region64: #{tpu_custom_call.1} parent=5 // pred_fallthru
        _
      %p2157 = scmp.le.s32.totalorder 2, %s21
      // Predicated region
      $region73: #{tpu_custom_call.1} parent=5 // pred_check
        %p2158 = pneg %p2157
      $region74: #{tpu_custom_call.1} parent=5 // pred_check_branch
        %2160 = sbr.rel (%p2158) target = $region76
      $region75: #{tpu_custom_call.1} parent=5 // pred_region
        %s2161 = ssub.s32 %s21, 2
        // Predicated region
        $region77: #{tpu_custom_call.1} parent=75 // pred_check
          %p2162 = pneg %p296
        $region78: #{tpu_custom_call.1} parent=75 // pred_check_branch
          %2164 = sbr.rel (%p2162) target = $region80
        $region79: #{tpu_custom_call.1} parent=75 // pred_region
          %s2165 = sand.u32 %s281, 1
          %s2166 = scalar_lea.sflag [#allocation4], %s2165
          %s2167 = sand.u32 %s281, 1
          %s2168 = smul.addr %s2167, 256
          %s2169 = scalar_lea.vmem [#allocation5], %s2168
          %2171 = dma.done %s2166, 4096
        $region80: #{tpu_custom_call.1} parent=75 // pred_fallthru
          _
      $region76: #{tpu_custom_call.1} parent=5 // pred_fallthru
        _
    $region6: #{tpu_custom_call.1} parent=1 // loop_footer
      %s25 = sadd.s32 1, %s21
    $region7: #{tpu_custom_call.1} parent=1 // loop_footer_branch
      %20 = sbr.rel target = $region3
    $region8: #{tpu_custom_call.1} parent=1 // loop_exit
      _
    %2172 = vsyncpa [#allocation3], 1
    %s2173 = scalar_lea.sflag [#allocation3], 1
    %2174 = vsyncpa %s2173, 1
    %2175 = vsyncpa [#allocation4], 1
    %s2176 = scalar_lea.sflag [#allocation4], 1
    %2177 = vsyncpa %s2176, 1

</llo_original>
